<compile_context>
chip_gen: v7x
topology: tpu7x:2x2x1
jax: 0.10.0
libtpu: 0.0.40
codegen_flags: <defaults>
</compile_context>

<pallas_src>
import jax
import jax.numpy as jnp
from jax.experimental import pallas as pl
from jax.experimental.pallas import tpu as pltpu

BN_EPS = 1e-5


def reta_kernel(eh_ref, r_ref, et_ref, ht_ref, tt_ref,
                w1_ref, w2h_ref, w2r_ref, w2t_ref,
                seg_ref, segt_ref,
                g1_ref, b1_lane_ref, g2_ref, b2_lane_ref,
                fcw1_ref, fcw2_ref, fcb_ref,
                out_ref):
    B, D = eh_ref.shape
    K = D - 2                       # conv output width for a 3x3 kernel on (3, D)
    T = ht_ref.shape[0]             # arity - 2 type pairs
    inv_n = 1.0 / float(B * K)      # BN divisor (biased batch stats)

    eh = eh_ref[...]
    rr = r_ref[...]
    et = et_ref[...]

    seg = seg_ref[...]              # (F*K, F) 0/1 segment matrix
    segt = segt_ref[...]            # (F, F*K)

    def shifts3(x):
        # 3 lane-shifted (B, K) windows of a (B, D) row plane.
        return [x[:, c:c + K] for c in range(3)]

    def cat3(x):
        # (B, 3K) im2col block for one conv row (taps c = 0, 1, 2).
        return jnp.concatenate(shifts3(x), axis=1)

    def mm(a, b):
        return jnp.dot(a, b, preferred_element_type=jnp.float32)

    def bn_relu(x, gamma, beta_lane):
        # Training-mode BatchNorm2d (+ReLU) over (B, K) per filter, filters
        # packed along lanes.  Two-pass (centered) stats; per-filter sums via
        # 0/1 segment matmuls on the otherwise-idle MXU.
        s_bf = mm(x, seg)                                        # (B, F)
        mean_f = jnp.sum(s_bf, axis=0, keepdims=True) * inv_n    # (1, F)
        xc = x - mm(mean_f, segt)                                # (B, F*K)
        ss_bf = mm(xc * xc, seg)                                 # (B, F)
        var_f = jnp.sum(ss_bf, axis=0, keepdims=True) * inv_n    # (1, F)
        scale_f = gamma * jax.lax.rsqrt(var_f + BN_EPS)          # (1, F)
        y = xc * mm(scale_f, segt) + beta_lane                   # (B, F*K)
        return jnp.maximum(y, 0.0)

    # ---- conv1 branch: (head, relation, tail) -> all filters in one matmul ----
    # Conv bias is intentionally dropped: it cancels exactly in (x - batch_mean).
    x1 = jnp.concatenate([cat3(eh), cat3(rr), cat3(et)], axis=1)   # (B, 9K)
    feat1 = bn_relu(mm(x1, w1_ref[...]), g1_ref[...], b1_lane_ref[...])

    # ---- conv2 branch: min over (head_type_t, relation, tail_type_t) ----
    # Relation-row contribution is type-independent: one matmul, reused.
    mid = mm(cat3(rr), w2r_ref[...])                               # (B, F*K)
    g2 = g2_ref[...]
    b2_lane = b2_lane_ref[...]
    # TODO(synk): switch to lax.fori_loop / a grid axis if arity grows large.
    feats = []
    for t in range(T):
        acc = (mid
               + mm(cat3(ht_ref[t]), w2h_ref[...])
               + mm(cat3(tt_ref[t]), w2t_ref[...]))
        feats.append(bn_relu(acc, g2, b2_lane))

    # Pairwise min tree (no serial minimum chain).
    while len(feats) > 1:
        nxt = [jnp.minimum(feats[i], feats[i + 1])
               for i in range(0, len(feats) - 1, 2)]
        if len(feats) % 2:
            nxt.append(feats[-1])
        feats = nxt
    min_feat = feats[0]

    # Fused final linear layer: two lane-packed FMAs + one lane reduction.
    fc_vec = feat1 * fcw1_ref[...] + min_feat * fcw2_ref[...]      # (B, F*K)
    out_ref[...] = jnp.sum(fc_vec, axis=1, keepdims=True) + fcb_ref[0]


def reta_forward(x_batch, arity, params):
    # Glue: embedding lookups / weight lane-packing in plain JAX.
    B = x_batch.shape[0]
    D = params["emb_relations"].shape[1]
    F = params["conv1_w"].shape[0]
    K = D - 2

    rel_ids = x_batch[:, 0::2][:, 0:2]        # (B, 2)
    ent_ids = x_batch[:, 1::2][:, 0:2]        # (B, 2)
    head_type_ids = x_batch[:, 0::2][:, 2:]   # (B, T)
    tail_type_ids = x_batch[:, 1::2][:, 2:]   # (B, T)

    rel_emb = params["emb_relations"][rel_ids]       # (B, 2, D)
    ent_emb = params["emb_entities"][ent_ids]        # (B, 2, D)
    # (T, B, D): one clean contiguous (B, D) tile per type pair in the kernel.
    ht_emb = params["emb_types"][head_type_ids.T]    # (T, B, D)
    tt_emb = params["emb_types"][tail_type_ids.T]    # (T, B, D)

    eh = ent_emb[:, 0, :]
    et = ent_emb[:, 1, :]
    r0 = rel_emb[:, 0, :]

    # ---- lane-packed weight prep (filters packed along the lane axis) ----
    eye_k = jnp.eye(K, dtype=jnp.float32)

    def expand_conv(w):                          # (F, 1, 3, 3) -> (9K, F*K)
        w9 = w.reshape(F, 9).astype(jnp.float32)
        big = w9.T[:, None, :, None] * eye_k[None, :, None, :]   # (9, K, F, K)
        return big.reshape(9 * K, F * K)

    w1_big = expand_conv(params["conv1_w"])
    w2_big = expand_conv(params["conv2_w"])
    w2_h, w2_r, w2_t = w2_big[:3 * K], w2_big[3 * K:6 * K], w2_big[6 * K:]

    seg = jnp.repeat(jnp.eye(F, dtype=jnp.float32), K, axis=0)    # (F*K, F)
    segt = seg.T                                                  # (F, F*K)

    g1 = params["bn1_gamma"][None, :].astype(jnp.float32)         # (1, F)
    g2 = params["bn2_gamma"][None, :].astype(jnp.float32)
    b1_lane = jnp.repeat(params["bn1_beta"], K)[None, :]          # (1, F*K)
    b2_lane = jnp.repeat(params["bn2_beta"], K)[None, :]

    fcw = params["fc_w"].reshape(-1)
    fcw1 = fcw[:F * K][None, :]                                   # (1, F*K)
    fcw2 = fcw[F * K:][None, :]                                   # (1, F*K)
    fcb = params["fc_b"].reshape(1)

    # NOTE: conv biases are not passed - under training-mode batch statistics
    # they cancel exactly in (x - mean) (and they are zero-initialized anyway).

    vmem = pl.BlockSpec(memory_space=pltpu.MemorySpace.VMEM)
    smem = pl.BlockSpec(memory_space=pltpu.MemorySpace.SMEM)

    return pl.pallas_call(
        reta_kernel,
        out_shape=jax.ShapeDtypeStruct((B, 1), jnp.float32),
        in_specs=[vmem, vmem, vmem, vmem, vmem,
                  vmem, vmem, vmem, vmem,
                  vmem, vmem,
                  vmem, vmem, vmem, vmem,
                  vmem, vmem, smem],
        out_specs=vmem,
        compiler_params=pltpu.CompilerParams(
            vmem_limit_bytes=32 * 1024 * 1024),
    )(eh, r0, et, ht_emb, tt_emb,
      w1_big, w2_h, w2_r, w2_t,
      seg, segt,
      g1, b1_lane, g2, b2_lane,
      fcw1, fcw2, fcb)


def reference_forward(x_batch, arity, params):
    # Pure-JAX reference (different code path: im2col + einsum) for validation.
    B = x_batch.shape[0]
    D = params["emb_relations"].shape[1]
    F = params["conv1_w"].shape[0]
    K = D - 2
    T = arity - 2

    rel = params["emb_relations"][x_batch[:, 0::2][:, 0:2]]
    ent = params["emb_entities"][x_batch[:, 1::2][:, 0:2]]
    ht = params["emb_types"][x_batch[:, 0::2][:, 2:]]
    tt = params["emb_types"][x_batch[:, 1::2][:, 2:]]

    def conv_bn_relu(img, w, b, g, be):
        patches = jnp.stack([img[:, r, c:c + K] for r in range(3) for c in range(3)],
                            axis=-1)                                     # (B, K, 9)
        out = jnp.einsum("bkp,fp->bfk", patches, w.reshape(F, 9)) + b[None, :, None]
        mean = out.mean(axis=(0, 2), keepdims=True)
        var = ((out - mean) ** 2).mean(axis=(0, 2), keepdims=True)
        y = (out - mean) / jnp.sqrt(var + BN_EPS) * g[None, :, None] + be[None, :, None]
        return jax.nn.relu(y)                                            # (B, F, K)

    img1 = jnp.stack([ent[:, 0], rel[:, 0], ent[:, 1]], axis=1)
    hrt = conv_bn_relu(img1, params["conv1_w"], params["conv1_b"],
                       params["bn1_gamma"], params["bn1_beta"]).reshape(B, -1)
    typ = []
    for t in range(T):
        img2 = jnp.stack([ht[:, t], rel[:, 0], tt[:, t]], axis=1)
        typ.append(conv_bn_relu(img2, params["conv2_w"], params["conv2_b"],
                                params["bn2_gamma"], params["bn2_beta"]).reshape(B, -1))
    min_val = jnp.min(jnp.stack(typ, axis=-1), axis=-1)
    feat = jnp.concatenate([hrt, min_val], axis=1)
    return feat @ params["fc_w"].reshape(-1)[:, None] + params["fc_b"]


def init_params(key, num_relations, num_entities, num_types, D, F):
    keys = jax.random.split(key, 6)
    bound = (1.0 / D) ** 0.5

    def emb(k, n):
        e = jax.random.uniform(k, (n, D), jnp.float32, -bound, bound)
        return e.at[0].set(0.0)     # padding_idx=0

    fan_in = 2 * F * (D - 2)                  # linear in_features
    std_fc = (2.0 / (fan_in + 1)) ** 0.5      # xavier_normal_ for (1, fan_in)
    return {
        "emb_relations": emb(keys[0], num_relations),
        "emb_entities": emb(keys[1], num_entities),
        "emb_types": emb(keys[2], num_types),
        "conv1_w": 0.1 * jax.random.truncated_normal(keys[3], -2.0, 2.0,
                                                     (F, 1, 3, 3), jnp.float32),
        "conv1_b": jnp.zeros((F,), jnp.float32),
        "conv2_w": 0.1 * jax.random.truncated_normal(keys[4], -2.0, 2.0,
                                                     (F, 1, 3, 3), jnp.float32),
        "conv2_b": jnp.zeros((F,), jnp.float32),
        "bn1_gamma": jnp.ones((F,), jnp.float32),
        "bn1_beta": jnp.zeros((F,), jnp.float32),
        "bn2_gamma": jnp.ones((F,), jnp.float32),
        "bn2_beta": jnp.zeros((F,), jnp.float32),
        "fc_w": std_fc * jax.random.normal(keys[5], (1, fan_in), jnp.float32),
        "fc_b": jnp.zeros((1,), jnp.float32),
    }


if __name__ == "__main__":
    # batch=8 fills all 8 f32 sublanes; F*K = 120 lanes ~ fills a vreg's lanes.
    B, arity, D, F = 8, 4, 32, 4          # batch, fact arity, embedding_size, num_filters
    num_relations = num_entities = num_types = 12

    key = jax.random.PRNGKey(0)
    kx, kp = jax.random.split(key)
    # x_batch layout (as in the torch module): even cols = [rel, rel, head_types...],
    #                                          odd  cols = [head, tail, tail_types...]
    x_batch = jax.random.randint(kx, (B, 2 * arity), 1, num_relations)
    params = init_params(kp, num_relations, num_entities, num_types, D, F)

    out = jax.block_until_ready(reta_forward(x_batch, arity, params))
    ref = reference_forward(x_batch, arity, params)

    assert out.shape == (B, 1), out.shape
    assert jnp.allclose(out, ref, atol=5e-4, rtol=5e-4), (out, ref)
    print("KERNEL_OK")
</pallas_src>

<mosaic_0001>
module attributes {stable_mosaic.version = 11 : i64} {
  func.func @reta_kernel(%arg0: memref<8x32xf32, #tpu.memory_space<vmem>>, %arg1: memref<8x32xf32, #tpu.memory_space<vmem>>, %arg2: memref<8x32xf32, #tpu.memory_space<vmem>>, %arg3: memref<2x8x32xf32, #tpu.memory_space<vmem>>, %arg4: memref<2x8x32xf32, #tpu.memory_space<vmem>>, %arg5: memref<270x120xf32, #tpu.memory_space<vmem>>, %arg6: memref<90x120xf32, #tpu.memory_space<vmem>>, %arg7: memref<90x120xf32, #tpu.memory_space<vmem>>, %arg8: memref<90x120xf32, #tpu.memory_space<vmem>>, %arg9: memref<120x4xf32, #tpu.memory_space<vmem>>, %arg10: memref<4x120xf32, #tpu.memory_space<vmem>>, %arg11: memref<1x4xf32, #tpu.memory_space<vmem>>, %arg12: memref<1x120xf32, #tpu.memory_space<vmem>>, %arg13: memref<1x4xf32, #tpu.memory_space<vmem>>, %arg14: memref<1x120xf32, #tpu.memory_space<vmem>>, %arg15: memref<1x120xf32, #tpu.memory_space<vmem>>, %arg16: memref<1x120xf32, #tpu.memory_space<vmem>>, %arg17: memref<1xf32, #tpu.memory_space<smem>>, %arg18: memref<8x1xf32, #tpu.memory_space<vmem>>) attributes {dimension_semantics = [], scalar_prefetch = 0 : i64, scratch_operands = 0 : i64, tpu.core_type = #tpu.core_type<tc>} {
    %c0 = arith.constant 0 : index
    %c0_0 = arith.constant 0 : index
    %0 = vector.load %arg0[%c0, %c0_0] : memref<8x32xf32, #tpu.memory_space<vmem>>, vector<8x32xf32>
    %c0_1 = arith.constant 0 : index
    %c0_2 = arith.constant 0 : index
    %1 = vector.load %arg1[%c0_1, %c0_2] : memref<8x32xf32, #tpu.memory_space<vmem>>, vector<8x32xf32>
    %c0_3 = arith.constant 0 : index
    %c0_4 = arith.constant 0 : index
    %2 = vector.load %arg2[%c0_3, %c0_4] : memref<8x32xf32, #tpu.memory_space<vmem>>, vector<8x32xf32>
    %c0_5 = arith.constant 0 : index
    %c0_6 = arith.constant 0 : index
    %3 = vector.load %arg9[%c0_5, %c0_6] : memref<120x4xf32, #tpu.memory_space<vmem>>, vector<120x4xf32>
    %c0_7 = arith.constant 0 : index
    %c0_8 = arith.constant 0 : index
    %4 = vector.load %arg10[%c0_7, %c0_8] : memref<4x120xf32, #tpu.memory_space<vmem>>, vector<4x120xf32>
    %5 = vector.extract_strided_slice %0 {offsets = [0, 0], sizes = [8, 30], strides = [1, 1]} : vector<8x32xf32> to vector<8x30xf32>
    %6 = vector.extract_strided_slice %0 {offsets = [0, 1], sizes = [8, 30], strides = [1, 1]} : vector<8x32xf32> to vector<8x30xf32>
    %7 = vector.extract_strided_slice %0 {offsets = [0, 2], sizes = [8, 30], strides = [1, 1]} : vector<8x32xf32> to vector<8x30xf32>
    %8 = tpu.concatenate %5, %6, %7 in 1 : vector<8x30xf32>, vector<8x30xf32>, vector<8x30xf32> -> vector<8x90xf32>
    %9 = vector.extract_strided_slice %1 {offsets = [0, 0], sizes = [8, 30], strides = [1, 1]} : vector<8x32xf32> to vector<8x30xf32>
    %10 = vector.extract_strided_slice %1 {offsets = [0, 1], sizes = [8, 30], strides = [1, 1]} : vector<8x32xf32> to vector<8x30xf32>
    %11 = vector.extract_strided_slice %1 {offsets = [0, 2], sizes = [8, 30], strides = [1, 1]} : vector<8x32xf32> to vector<8x30xf32>
    %12 = tpu.concatenate %9, %10, %11 in 1 : vector<8x30xf32>, vector<8x30xf32>, vector<8x30xf32> -> vector<8x90xf32>
    %13 = vector.extract_strided_slice %2 {offsets = [0, 0], sizes = [8, 30], strides = [1, 1]} : vector<8x32xf32> to vector<8x30xf32>
    %14 = vector.extract_strided_slice %2 {offsets = [0, 1], sizes = [8, 30], strides = [1, 1]} : vector<8x32xf32> to vector<8x30xf32>
    %15 = vector.extract_strided_slice %2 {offsets = [0, 2], sizes = [8, 30], strides = [1, 1]} : vector<8x32xf32> to vector<8x30xf32>
    %16 = tpu.concatenate %13, %14, %15 in 1 : vector<8x30xf32>, vector<8x30xf32>, vector<8x30xf32> -> vector<8x90xf32>
    %17 = tpu.concatenate %8, %12, %16 in 1 : vector<8x90xf32>, vector<8x90xf32>, vector<8x90xf32> -> vector<8x270xf32>
    %c0_9 = arith.constant 0 : index
    %c0_10 = arith.constant 0 : index
    %18 = vector.load %arg5[%c0_9, %c0_10] : memref<270x120xf32, #tpu.memory_space<vmem>>, vector<270x120xf32>
    %cst = arith.constant dense<0.000000e+00> : vector<8x120xf32>
    %19 = tpu.matmul %17, %18, %cst {dimension_numbers = #tpu.dot_dimension_numbers<[1], [0], [0], [1], [0, 0, 1, 1], [], []>} : vector<8x270xf32>, vector<270x120xf32>, vector<8x120xf32> -> vector<8x120xf32>
    %c0_11 = arith.constant 0 : index
    %c0_12 = arith.constant 0 : index
    %20 = vector.load %arg11[%c0_11, %c0_12] : memref<1x4xf32, #tpu.memory_space<vmem>>, vector<1x4xf32>
    %c0_13 = arith.constant 0 : index
    %c0_14 = arith.constant 0 : index
    %21 = vector.load %arg12[%c0_13, %c0_14] : memref<1x120xf32, #tpu.memory_space<vmem>>, vector<1x120xf32>
    %cst_15 = arith.constant dense<0.000000e+00> : vector<8x4xf32>
    %22 = tpu.matmul %19, %3, %cst_15 {dimension_numbers = #tpu.dot_dimension_numbers<[1], [0], [0], [1], [0, 0, 1, 1], [], []>} : vector<8x120xf32>, vector<120x4xf32>, vector<8x4xf32> -> vector<8x4xf32>
    %cst_16 = arith.constant dense<0.000000e+00> : vector<4xf32>
    %23 = vector.multi_reduction <add>, %22, %cst_16 [0] : vector<8x4xf32> to vector<4xf32>
    %24 = vector.shape_cast %23 : vector<4xf32> to vector<1x4xf32>
    %cst_17 = arith.constant 0.00416666688 : f32
    %25 = vector.broadcast %cst_17 : f32 to vector<1x4xf32>
    %26 = arith.mulf %24, %25 : vector<1x4xf32>
    %cst_18 = arith.constant dense<0.000000e+00> : vector<1x120xf32>
    %27 = tpu.matmul %26, %4, %cst_18 {dimension_numbers = #tpu.dot_dimension_numbers<[1], [0], [0], [1], [0, 0, 1, 1], [], []>} : vector<1x4xf32>, vector<4x120xf32>, vector<1x120xf32> -> vector<1x120xf32>
    %28 = vector.broadcast %27 : vector<1x120xf32> to vector<8x120xf32>
    %29 = arith.subf %19, %28 : vector<8x120xf32>
    %30 = arith.mulf %29, %29 : vector<8x120xf32>
    %cst_19 = arith.constant dense<0.000000e+00> : vector<8x4xf32>
    %31 = tpu.matmul %30, %3, %cst_19 {dimension_numbers = #tpu.dot_dimension_numbers<[1], [0], [0], [1], [0, 0, 1, 1], [], []>} : vector<8x120xf32>, vector<120x4xf32>, vector<8x4xf32> -> vector<8x4xf32>
    %cst_20 = arith.constant dense<0.000000e+00> : vector<4xf32>
    %32 = vector.multi_reduction <add>, %31, %cst_20 [0] : vector<8x4xf32> to vector<4xf32>
    %33 = vector.shape_cast %32 : vector<4xf32> to vector<1x4xf32>
    %cst_21 = arith.constant 0.00416666688 : f32
    %34 = vector.broadcast %cst_21 : f32 to vector<1x4xf32>
    %35 = arith.mulf %33, %34 : vector<1x4xf32>
    %cst_22 = arith.constant 9.99999974E-6 : f32
    %36 = vector.broadcast %cst_22 : f32 to vector<1x4xf32>
    %37 = arith.addf %35, %36 : vector<1x4xf32>
    %38 = math.rsqrt %37 : vector<1x4xf32>
    %39 = arith.mulf %20, %38 : vector<1x4xf32>
    %cst_23 = arith.constant dense<0.000000e+00> : vector<1x120xf32>
    %40 = tpu.matmul %39, %4, %cst_23 {dimension_numbers = #tpu.dot_dimension_numbers<[1], [0], [0], [1], [0, 0, 1, 1], [], []>} : vector<1x4xf32>, vector<4x120xf32>, vector<1x120xf32> -> vector<1x120xf32>
    %41 = vector.broadcast %40 : vector<1x120xf32> to vector<8x120xf32>
    %42 = arith.mulf %29, %41 : vector<8x120xf32>
    %43 = vector.broadcast %21 : vector<1x120xf32> to vector<8x120xf32>
    %44 = arith.addf %42, %43 : vector<8x120xf32>
    %cst_24 = arith.constant 0.000000e+00 : f32
    %45 = vector.broadcast %cst_24 : f32 to vector<8x120xf32>
    %46 = arith.maximumf %44, %45 : vector<8x120xf32>
    %47 = vector.extract_strided_slice %1 {offsets = [0, 0], sizes = [8, 30], strides = [1, 1]} : vector<8x32xf32> to vector<8x30xf32>
    %48 = vector.extract_strided_slice %1 {offsets = [0, 1], sizes = [8, 30], strides = [1, 1]} : vector<8x32xf32> to vector<8x30xf32>
    %49 = vector.extract_strided_slice %1 {offsets = [0, 2], sizes = [8, 30], strides = [1, 1]} : vector<8x32xf32> to vector<8x30xf32>
    %50 = tpu.concatenate %47, %48, %49 in 1 : vector<8x30xf32>, vector<8x30xf32>, vector<8x30xf32> -> vector<8x90xf32>
    %c0_25 = arith.constant 0 : index
    %c0_26 = arith.constant 0 : index
    %51 = vector.load %arg7[%c0_25, %c0_26] : memref<90x120xf32, #tpu.memory_space<vmem>>, vector<90x120xf32>
    %cst_27 = arith.constant dense<0.000000e+00> : vector<8x120xf32>
    %52 = tpu.matmul %50, %51, %cst_27 {dimension_numbers = #tpu.dot_dimension_numbers<[1], [0], [0], [1], [0, 0, 1, 1], [], []>} : vector<8x90xf32>, vector<90x120xf32>, vector<8x120xf32> -> vector<8x120xf32>
    %c0_28 = arith.constant 0 : index
    %c0_29 = arith.constant 0 : index
    %53 = vector.load %arg13[%c0_28, %c0_29] : memref<1x4xf32, #tpu.memory_space<vmem>>, vector<1x4xf32>
    %c0_30 = arith.constant 0 : index
    %c0_31 = arith.constant 0 : index
    %54 = vector.load %arg14[%c0_30, %c0_31] : memref<1x120xf32, #tpu.memory_space<vmem>>, vector<1x120xf32>
    %c0_32 = arith.constant 0 : index
    %c0_33 = arith.constant 0 : index
    %c0_34 = arith.constant 0 : index
    %55 = vector.load %arg3[%c0_32, %c0_33, %c0_34] : memref<2x8x32xf32, #tpu.memory_space<vmem>>, vector<1x8x32xf32>
    %56 = vector.shape_cast %55 : vector<1x8x32xf32> to vector<8x32xf32>
    %57 = vector.extract_strided_slice %56 {offsets = [0, 0], sizes = [8, 30], strides = [1, 1]} : vector<8x32xf32> to vector<8x30xf32>
    %58 = vector.extract_strided_slice %56 {offsets = [0, 1], sizes = [8, 30], strides = [1, 1]} : vector<8x32xf32> to vector<8x30xf32>
    %59 = vector.extract_strided_slice %56 {offsets = [0, 2], sizes = [8, 30], strides = [1, 1]} : vector<8x32xf32> to vector<8x30xf32>
    %60 = tpu.concatenate %57, %58, %59 in 1 : vector<8x30xf32>, vector<8x30xf32>, vector<8x30xf32> -> vector<8x90xf32>
    %c0_35 = arith.constant 0 : index
    %c0_36 = arith.constant 0 : index
    %61 = vector.load %arg6[%c0_35, %c0_36] : memref<90x120xf32, #tpu.memory_space<vmem>>, vector<90x120xf32>
    %cst_37 = arith.constant dense<0.000000e+00> : vector<8x120xf32>
    %62 = tpu.matmul %60, %61, %cst_37 {dimension_numbers = #tpu.dot_dimension_numbers<[1], [0], [0], [1], [0, 0, 1, 1], [], []>} : vector<8x90xf32>, vector<90x120xf32>, vector<8x120xf32> -> vector<8x120xf32>
    %63 = arith.addf %52, %62 : vector<8x120xf32>
    %c0_38 = arith.constant 0 : index
    %c0_39 = arith.constant 0 : index
    %c0_40 = arith.constant 0 : index
    %64 = vector.load %arg4[%c0_38, %c0_39, %c0_40] : memref<2x8x32xf32, #tpu.memory_space<vmem>>, vector<1x8x32xf32>
    %65 = vector.shape_cast %64 : vector<1x8x32xf32> to vector<8x32xf32>
    %66 = vector.extract_strided_slice %65 {offsets = [0, 0], sizes = [8, 30], strides = [1, 1]} : vector<8x32xf32> to vector<8x30xf32>
    %67 = vector.extract_strided_slice %65 {offsets = [0, 1], sizes = [8, 30], strides = [1, 1]} : vector<8x32xf32> to vector<8x30xf32>
    %68 = vector.extract_strided_slice %65 {offsets = [0, 2], sizes = [8, 30], strides = [1, 1]} : vector<8x32xf32> to vector<8x30xf32>
    %69 = tpu.concatenate %66, %67, %68 in 1 : vector<8x30xf32>, vector<8x30xf32>, vector<8x30xf32> -> vector<8x90xf32>
    %c0_41 = arith.constant 0 : index
    %c0_42 = arith.constant 0 : index
    %70 = vector.load %arg8[%c0_41, %c0_42] : memref<90x120xf32, #tpu.memory_space<vmem>>, vector<90x120xf32>
    %cst_43 = arith.constant dense<0.000000e+00> : vector<8x120xf32>
    %71 = tpu.matmul %69, %70, %cst_43 {dimension_numbers = #tpu.dot_dimension_numbers<[1], [0], [0], [1], [0, 0, 1, 1], [], []>} : vector<8x90xf32>, vector<90x120xf32>, vector<8x120xf32> -> vector<8x120xf32>
    %72 = arith.addf %63, %71 : vector<8x120xf32>
    %cst_44 = arith.constant dense<0.000000e+00> : vector<8x4xf32>
    %73 = tpu.matmul %72, %3, %cst_44 {dimension_numbers = #tpu.dot_dimension_numbers<[1], [0], [0], [1], [0, 0, 1, 1], [], []>} : vector<8x120xf32>, vector<120x4xf32>, vector<8x4xf32> -> vector<8x4xf32>
    %cst_45 = arith.constant dense<0.000000e+00> : vector<4xf32>
    %74 = vector.multi_reduction <add>, %73, %cst_45 [0] : vector<8x4xf32> to vector<4xf32>
    %75 = vector.shape_cast %74 : vector<4xf32> to vector<1x4xf32>
    %cst_46 = arith.constant 0.00416666688 : f32
    %76 = vector.broadcast %cst_46 : f32 to vector<1x4xf32>
    %77 = arith.mulf %75, %76 : vector<1x4xf32>
    %cst_47 = arith.constant dense<0.000000e+00> : vector<1x120xf32>
    %78 = tpu.matmul %77, %4, %cst_47 {dimension_numbers = #tpu.dot_dimension_numbers<[1], [0], [0], [1], [0, 0, 1, 1], [], []>} : vector<1x4xf32>, vector<4x120xf32>, vector<1x120xf32> -> vector<1x120xf32>
    %79 = vector.broadcast %78 : vector<1x120xf32> to vector<8x120xf32>
    %80 = arith.subf %72, %79 : vector<8x120xf32>
    %81 = arith.mulf %80, %80 : vector<8x120xf32>
    %cst_48 = arith.constant dense<0.000000e+00> : vector<8x4xf32>
    %82 = tpu.matmul %81, %3, %cst_48 {dimension_numbers = #tpu.dot_dimension_numbers<[1], [0], [0], [1], [0, 0, 1, 1], [], []>} : vector<8x120xf32>, vector<120x4xf32>, vector<8x4xf32> -> vector<8x4xf32>
    %cst_49 = arith.constant dense<0.000000e+00> : vector<4xf32>
    %83 = vector.multi_reduction <add>, %82, %cst_49 [0] : vector<8x4xf32> to vector<4xf32>
    %84 = vector.shape_cast %83 : vector<4xf32> to vector<1x4xf32>
    %cst_50 = arith.constant 0.00416666688 : f32
    %85 = vector.broadcast %cst_50 : f32 to vector<1x4xf32>
    %86 = arith.mulf %84, %85 : vector<1x4xf32>
    %cst_51 = arith.constant 9.99999974E-6 : f32
    %87 = vector.broadcast %cst_51 : f32 to vector<1x4xf32>
    %88 = arith.addf %86, %87 : vector<1x4xf32>
    %89 = math.rsqrt %88 : vector<1x4xf32>
    %90 = arith.mulf %53, %89 : vector<1x4xf32>
    %cst_52 = arith.constant dense<0.000000e+00> : vector<1x120xf32>
    %91 = tpu.matmul %90, %4, %cst_52 {dimension_numbers = #tpu.dot_dimension_numbers<[1], [0], [0], [1], [0, 0, 1, 1], [], []>} : vector<1x4xf32>, vector<4x120xf32>, vector<1x120xf32> -> vector<1x120xf32>
    %92 = vector.broadcast %91 : vector<1x120xf32> to vector<8x120xf32>
    %93 = arith.mulf %80, %92 : vector<8x120xf32>
    %94 = vector.broadcast %54 : vector<1x120xf32> to vector<8x120xf32>
    %95 = arith.addf %93, %94 : vector<8x120xf32>
    %cst_53 = arith.constant 0.000000e+00 : f32
    %96 = vector.broadcast %cst_53 : f32 to vector<8x120xf32>
    %97 = arith.maximumf %95, %96 : vector<8x120xf32>
    %c1 = arith.constant 1 : index
    %c0_54 = arith.constant 0 : index
    %c0_55 = arith.constant 0 : index
    %98 = vector.load %arg3[%c1, %c0_54, %c0_55] : memref<2x8x32xf32, #tpu.memory_space<vmem>>, vector<1x8x32xf32>
    %99 = vector.shape_cast %98 : vector<1x8x32xf32> to vector<8x32xf32>
    %100 = vector.extract_strided_slice %99 {offsets = [0, 0], sizes = [8, 30], strides = [1, 1]} : vector<8x32xf32> to vector<8x30xf32>
    %101 = vector.extract_strided_slice %99 {offsets = [0, 1], sizes = [8, 30], strides = [1, 1]} : vector<8x32xf32> to vector<8x30xf32>
    %102 = vector.extract_strided_slice %99 {offsets = [0, 2], sizes = [8, 30], strides = [1, 1]} : vector<8x32xf32> to vector<8x30xf32>
    %103 = tpu.concatenate %100, %101, %102 in 1 : vector<8x30xf32>, vector<8x30xf32>, vector<8x30xf32> -> vector<8x90xf32>
    %c0_56 = arith.constant 0 : index
    %c0_57 = arith.constant 0 : index
    %104 = vector.load %arg6[%c0_56, %c0_57] : memref<90x120xf32, #tpu.memory_space<vmem>>, vector<90x120xf32>
    %cst_58 = arith.constant dense<0.000000e+00> : vector<8x120xf32>
    %105 = tpu.matmul %103, %104, %cst_58 {dimension_numbers = #tpu.dot_dimension_numbers<[1], [0], [0], [1], [0, 0, 1, 1], [], []>} : vector<8x90xf32>, vector<90x120xf32>, vector<8x120xf32> -> vector<8x120xf32>
    %106 = arith.addf %52, %105 : vector<8x120xf32>
    %c1_59 = arith.constant 1 : index
    %c0_60 = arith.constant 0 : index
    %c0_61 = arith.constant 0 : index
    %107 = vector.load %arg4[%c1_59, %c0_60, %c0_61] : memref<2x8x32xf32, #tpu.memory_space<vmem>>, vector<1x8x32xf32>
    %108 = vector.shape_cast %107 : vector<1x8x32xf32> to vector<8x32xf32>
    %109 = vector.extract_strided_slice %108 {offsets = [0, 0], sizes = [8, 30], strides = [1, 1]} : vector<8x32xf32> to vector<8x30xf32>
    %110 = vector.extract_strided_slice %108 {offsets = [0, 1], sizes = [8, 30], strides = [1, 1]} : vector<8x32xf32> to vector<8x30xf32>
    %111 = vector.extract_strided_slice %108 {offsets = [0, 2], sizes = [8, 30], strides = [1, 1]} : vector<8x32xf32> to vector<8x30xf32>
    %112 = tpu.concatenate %109, %110, %111 in 1 : vector<8x30xf32>, vector<8x30xf32>, vector<8x30xf32> -> vector<8x90xf32>
    %c0_62 = arith.constant 0 : index
    %c0_63 = arith.constant 0 : index
    %113 = vector.load %arg8[%c0_62, %c0_63] : memref<90x120xf32, #tpu.memory_space<vmem>>, vector<90x120xf32>
    %cst_64 = arith.constant dense<0.000000e+00> : vector<8x120xf32>
    %114 = tpu.matmul %112, %113, %cst_64 {dimension_numbers = #tpu.dot_dimension_numbers<[1], [0], [0], [1], [0, 0, 1, 1], [], []>} : vector<8x90xf32>, vector<90x120xf32>, vector<8x120xf32> -> vector<8x120xf32>
    %115 = arith.addf %106, %114 : vector<8x120xf32>
    %cst_65 = arith.constant dense<0.000000e+00> : vector<8x4xf32>
    %116 = tpu.matmul %115, %3, %cst_65 {dimension_numbers = #tpu.dot_dimension_numbers<[1], [0], [0], [1], [0, 0, 1, 1], [], []>} : vector<8x120xf32>, vector<120x4xf32>, vector<8x4xf32> -> vector<8x4xf32>
    %cst_66 = arith.constant dense<0.000000e+00> : vector<4xf32>
    %117 = vector.multi_reduction <add>, %116, %cst_66 [0] : vector<8x4xf32> to vector<4xf32>
    %118 = vector.shape_cast %117 : vector<4xf32> to vector<1x4xf32>
    %cst_67 = arith.constant 0.00416666688 : f32
    %119 = vector.broadcast %cst_67 : f32 to vector<1x4xf32>
    %120 = arith.mulf %118, %119 : vector<1x4xf32>
    %cst_68 = arith.constant dense<0.000000e+00> : vector<1x120xf32>
    %121 = tpu.matmul %120, %4, %cst_68 {dimension_numbers = #tpu.dot_dimension_numbers<[1], [0], [0], [1], [0, 0, 1, 1], [], []>} : vector<1x4xf32>, vector<4x120xf32>, vector<1x120xf32> -> vector<1x120xf32>
    %122 = vector.broadcast %121 : vector<1x120xf32> to vector<8x120xf32>
    %123 = arith.subf %115, %122 : vector<8x120xf32>
    %124 = arith.mulf %123, %123 : vector<8x120xf32>
    %cst_69 = arith.constant dense<0.000000e+00> : vector<8x4xf32>
    %125 = tpu.matmul %124, %3, %cst_69 {dimension_numbers = #tpu.dot_dimension_numbers<[1], [0], [0], [1], [0, 0, 1, 1], [], []>} : vector<8x120xf32>, vector<120x4xf32>, vector<8x4xf32> -> vector<8x4xf32>
    %cst_70 = arith.constant dense<0.000000e+00> : vector<4xf32>
    %126 = vector.multi_reduction <add>, %125, %cst_70 [0] : vector<8x4xf32> to vector<4xf32>
    %127 = vector.shape_cast %126 : vector<4xf32> to vector<1x4xf32>
    %cst_71 = arith.constant 0.00416666688 : f32
    %128 = vector.broadcast %cst_71 : f32 to vector<1x4xf32>
    %129 = arith.mulf %127, %128 : vector<1x4xf32>
    %cst_72 = arith.constant 9.99999974E-6 : f32
    %130 = vector.broadcast %cst_72 : f32 to vector<1x4xf32>
    %131 = arith.addf %129, %130 : vector<1x4xf32>
    %132 = math.rsqrt %131 : vector<1x4xf32>
    %133 = arith.mulf %53, %132 : vector<1x4xf32>
    %cst_73 = arith.constant dense<0.000000e+00> : vector<1x120xf32>
    %134 = tpu.matmul %133, %4, %cst_73 {dimension_numbers = #tpu.dot_dimension_numbers<[1], [0], [0], [1], [0, 0, 1, 1], [], []>} : vector<1x4xf32>, vector<4x120xf32>, vector<1x120xf32> -> vector<1x120xf32>
    %135 = vector.broadcast %134 : vector<1x120xf32> to vector<8x120xf32>
    %136 = arith.mulf %123, %135 : vector<8x120xf32>
    %137 = vector.broadcast %54 : vector<1x120xf32> to vector<8x120xf32>
    %138 = arith.addf %136, %137 : vector<8x120xf32>
    %cst_74 = arith.constant 0.000000e+00 : f32
    %139 = vector.broadcast %cst_74 : f32 to vector<8x120xf32>
    %140 = arith.maximumf %138, %139 : vector<8x120xf32>
    %141 = arith.minimumf %97, %140 : vector<8x120xf32>
    %c0_75 = arith.constant 0 : index
    %c0_76 = arith.constant 0 : index
    %142 = vector.load %arg15[%c0_75, %c0_76] : memref<1x120xf32, #tpu.memory_space<vmem>>, vector<1x120xf32>
    %143 = vector.broadcast %142 : vector<1x120xf32> to vector<8x120xf32>
    %144 = arith.mulf %46, %143 : vector<8x120xf32>
    %c0_77 = arith.constant 0 : index
    %c0_78 = arith.constant 0 : index
    %145 = vector.load %arg16[%c0_77, %c0_78] : memref<1x120xf32, #tpu.memory_space<vmem>>, vector<1x120xf32>
    %146 = vector.broadcast %145 : vector<1x120xf32> to vector<8x120xf32>
    %147 = arith.mulf %141, %146 : vector<8x120xf32>
    %148 = arith.addf %144, %147 : vector<8x120xf32>
    %cst_79 = arith.constant dense<0.000000e+00> : vector<8xf32>
    %149 = vector.multi_reduction <add>, %148, %cst_79 [1] : vector<8x120xf32> to vector<8xf32>
    %150 = vector.shape_cast %149 : vector<8xf32> to vector<8x1xf32>
    %c0_80 = arith.constant 0 : index
    %151 = memref.load %arg17[%c0_80] : memref<1xf32, #tpu.memory_space<smem>>
    %152 = vector.broadcast %151 : f32 to vector<8x1xf32>
    %153 = arith.addf %150, %152 : vector<8x1xf32>
    %c0_81 = arith.constant 0 : index
    %c0_82 = arith.constant 0 : index
    %154 = vector.load %arg18[%c0_81, %c0_82] : memref<8x1xf32, #tpu.memory_space<vmem>>, vector<8x1xf32>
    tpu.vector_store %arg18[%c0_81, %c0_82], %153 {strides = array<i32>} : memref<8x1xf32, #tpu.memory_space<vmem>>, vector<8x1xf32>,
    return
  }
}

</mosaic_0001>

<llo_original>
// kernel: tpu_custom_call.1
$region0: #{tpu_custom_call.1}
  #allocation0 [shape = 'u32[]', space=smem, size = 0x4, offset = 0x4, fixed_abs, tag = 'smem constant byte address 0x4 - core index']
  #allocation1 [shape = 'u32[144,128]{1,0:T(1,128)}', space=vmem, size = 0x12000, scoped, tag = 'internal scratch']
  #allocation2 [shape = 'f32[1]{0:T(128)S(6)}', space=smem, size = 0x200, scoped, tag = 'scoped memory for tpu_custom_call.1']
  %s0 = inlined_call_operand.vmem [shape: f32[8,32], index: 0, kind: input, shape index: {}]
  %s1 = inlined_call_operand.vmem [shape: f32[8,32], index: 1, kind: input, shape index: {}]
  %s2 = inlined_call_operand.hbm [shape: f32[8,32], index: 2, kind: input, shape index: {}]
  %s3 = inlined_call_operand.vmem [shape: f32[2,8,32], index: 3, kind: input, shape index: {}]
  %s4 = inlined_call_operand.vmem [shape: f32[2,8,32], index: 4, kind: input, shape index: {}]
  %s5 = inlined_call_operand.hbm [shape: f32[270,120], index: 5, kind: input, shape index: {}]
  %s6 = inlined_call_operand.vmem [shape: f32[90,120], index: 6, kind: input, shape index: {}]
  %s7 = inlined_call_operand.hbm [shape: f32[90,120], index: 7, kind: input, shape index: {}]
  %s8 = inlined_call_operand.hbm [shape: f32[90,120], index: 8, kind: input, shape index: {}]
  %s9 = inlined_call_operand.vmem [shape: f32[120,4], index: 9, kind: input, shape index: {}]
  %s10 = inlined_call_operand.vmem [shape: f32[4,120], index: 10, kind: input, shape index: {}]
  %s11 = inlined_call_operand.vmem [shape: f32[1,4], index: 11, kind: input, shape index: {}]
  %s12 = inlined_call_operand.vmem [shape: f32[1,120], index: 12, kind: input, shape index: {}]
  %s13 = inlined_call_operand.vmem [shape: f32[1,4], index: 13, kind: input, shape index: {}]
  %s14 = inlined_call_operand.vmem [shape: f32[1,120], index: 14, kind: input, shape index: {}]
  %s15 = inlined_call_operand.vmem [shape: f32[1,120], index: 15, kind: input, shape index: {}]
  %s16 = inlined_call_operand.vmem [shape: f32[1,120], index: 16, kind: input, shape index: {}]
  %s17 = inlined_call_operand.<no memory space> [shape: f32[1], index: 17, kind: input, shape index: {}]
  %s18 = inlined_call_operand.vmem [shape: f32[8,1], index: 18, kind: output, shape index: {}]
  %s19 = sld [smem:[#allocation0]]
  $region98: #{tpu_custom_call.1} parent=0
    _
  %s21 = ssub.s32 1, %s19
  %s22 = scalar_select 0, %s21, %s19
  %23 = sst [smem:[#allocation2]] %s17
  $region1: #{tpu_custom_call.1} parent=0
    #allocation3 [shape = 'u8[4096]{0}', space=vmem, size = 0x1000, scoped, tag = 'input window, operand 2, single buffered']
    #allocation4 [shape = 's32[1]{0}', space=sflag, size = 0x4, scoped, tag = 'scoped memory for tpu_custom_call.1']
    #allocation5 [shape = 'u8[139264]{0}', space=vmem, size = 0x22000, scoped, tag = 'input window, operand 5, single buffered']
    #allocation6 [shape = 's32[1]{0}', space=sflag, size = 0x4, scoped, tag = 'scoped memory for tpu_custom_call.1']
    #allocation7 [shape = 'u8[49152]{0}', space=vmem, size = 0xc000, scoped, tag = 'input window, operand 7, single buffered']
    #allocation8 [shape = 'u8[49152]{0}', space=vmem, size = 0xc000, scoped, tag = 'input window, operand 8, single buffered']
    #allocation9 [shape = 's32[1]{0}', space=sflag, size = 0x4, scoped, tag = 'scoped memory for tpu_custom_call.1']
    %24 = vsyncpa [#allocation4], 0
    %25 = vsyncpa [#allocation6], 0
    %26 = vsyncpa [#allocation9], 0
    // Predicated region
    $region2: #{tpu_custom_call.1} parent=1 // pred_check
      _
    $region3: #{tpu_custom_call.1} parent=1 // pred_check_branch
      %28 = sbr.rel (0) target = $region5
    $region4: #{tpu_custom_call.1} parent=1 // pred_region
      _
    $region5: #{tpu_custom_call.1} parent=1 // pred_fallthru
      _
    // Predicated region
    $region6: #{tpu_custom_call.1} parent=1 // pred_check
      _
    $region7: #{tpu_custom_call.1} parent=1 // pred_check_branch
      %30 = sbr.rel (0) target = $region9
    $region8: #{tpu_custom_call.1} parent=1 // pred_region
      _
    $region9: #{tpu_custom_call.1} parent=1 // pred_fallthru
      _
    // Predicated region
    $region10: #{tpu_custom_call.1} parent=1 // pred_check
      _
    $region11: #{tpu_custom_call.1} parent=1 // pred_check_branch
      %32 = sbr.rel (0) target = $region13
    $region12: #{tpu_custom_call.1} parent=1 // pred_region
      %s34 = ssub.s32 128, 128
      %35 = vsyncadd [#allocation4], %s34
      %s37 = sshll.u32 [#allocation3], 4
      %s38 = int_to_ptr.vmem [resolvable:$true] %s37
      %40 = dma.hbm_to_vmem [thread:$0]  %s2, 128, %s38, [#allocation4]
    $region13: #{tpu_custom_call.1} parent=1 // pred_fallthru
      _
    // Predicated region
    $region14: #{tpu_custom_call.1} parent=1 // pred_check
      _
    $region15: #{tpu_custom_call.1} parent=1 // pred_check_branch
      %42 = sbr.rel (0) target = $region17
    $region16: #{tpu_custom_call.1} parent=1 // pred_region
      _
    $region17: #{tpu_custom_call.1} parent=1 // pred_fallthru
      _
    // Predicated region
    $region18: #{tpu_custom_call.1} parent=1 // pred_check
      _
    $region19: #{tpu_custom_call.1} parent=1 // pred_check_branch
      %44 = sbr.rel (0) target = $region21
    $region20: #{tpu_custom_call.1} parent=1 // pred_region
      _
    $region21: #{tpu_custom_call.1} parent=1 // pred_fallthru
      _
    // Predicated region
    $region22: #{tpu_custom_call.1} parent=1 // pred_check
      _
    $region23: #{tpu_custom_call.1} parent=1 // pred_check_branch
      %46 = sbr.rel (0) target = $region25
    $region24: #{tpu_custom_call.1} parent=1 // pred_region
      %s48 = ssub.s32 4352, 4352
      %49 = vsyncadd [#allocation6], %s48
      %s50 = sshll.u32 [#allocation5], 4
      %s51 = int_to_ptr.vmem [resolvable:$true] %s50
      %56 = dma.hbm_to_vmem [thread:$0]  %s5, 4352, %s51, [#allocation6], 128, 128, 8
    $region25: #{tpu_custom_call.1} parent=1 // pred_fallthru
      _
    // Predicated region
    $region26: #{tpu_custom_call.1} parent=1 // pred_check
      _
    $region27: #{tpu_custom_call.1} parent=1 // pred_check_branch
      %58 = sbr.rel (0) target = $region29
    $region28: #{tpu_custom_call.1} parent=1 // pred_region
      _
    $region29: #{tpu_custom_call.1} parent=1 // pred_fallthru
      _
    // Predicated region
    $region30: #{tpu_custom_call.1} parent=1 // pred_check
      _
    $region31: #{tpu_custom_call.1} parent=1 // pred_check_branch
      %60 = sbr.rel (0) target = $region33
    $region32: #{tpu_custom_call.1} parent=1 // pred_region
      %s62 = ssub.s32 1536, 1536
      %63 = vsyncadd [#allocation6], %s62
      %s64 = sshll.u32 [#allocation7], 4
      %s65 = int_to_ptr.vmem [resolvable:$true] %s64
      %70 = dma.hbm_to_vmem [thread:$0]  %s7, 1536, %s65, [#allocation6], 128, 128, 8
    $region33: #{tpu_custom_call.1} parent=1 // pred_fallthru
      _
    // Predicated region
    $region34: #{tpu_custom_call.1} parent=1 // pred_check
      _
    $region35: #{tpu_custom_call.1} parent=1 // pred_check_branch
      %72 = sbr.rel (0) target = $region37
    $region36: #{tpu_custom_call.1} parent=1 // pred_region
      %s74 = ssub.s32 1536, 1536
      %75 = vsyncadd [#allocation9], %s74
      %s76 = sshll.u32 [#allocation8], 4
      %s77 = int_to_ptr.vmem [resolvable:$true] %s76
      %82 = dma.hbm_to_vmem [thread:$0]  %s8, 1536, %s77, [#allocation9], 128, 128, 8
    $region37: #{tpu_custom_call.1} parent=1 // pred_fallthru
      _
    // Predicated region
    $region38: #{tpu_custom_call.1} parent=1 // pred_check
      _
    $region39: #{tpu_custom_call.1} parent=1 // pred_check_branch
      %84 = sbr.rel (0) target = $region41
    $region40: #{tpu_custom_call.1} parent=1 // pred_region
      _
    $region41: #{tpu_custom_call.1} parent=1 // pred_fallthru
      _
    // Predicated region
    $region42: #{tpu_custom_call.1} parent=1 // pred_check
      _
    $region43: #{tpu_custom_call.1} parent=1 // pred_check_branch
      %86 = sbr.rel (0) target = $region45
    $region44: #{tpu_custom_call.1} parent=1 // pred_region
      _
    $region45: #{tpu_custom_call.1} parent=1 // pred_fallthru
      _
    // Predicated region
    $region46: #{tpu_custom_call.1} parent=1 // pred_check
      _
    $region47: #{tpu_custom_call.1} parent=1 // pred_check_branch
      %88 = sbr.rel (0) target = $region49
    $region48: #{tpu_custom_call.1} parent=1 // pred_region
      _
    $region49: #{tpu_custom_call.1} parent=1 // pred_fallthru
      _
    // Predicated region
    $region50: #{tpu_custom_call.1} parent=1 // pred_check
      _
    $region51: #{tpu_custom_call.1} parent=1 // pred_check_branch
      %90 = sbr.rel (0) target = $region53
    $region52: #{tpu_custom_call.1} parent=1 // pred_region
      _
    $region53: #{tpu_custom_call.1} parent=1 // pred_fallthru
      _
    // Predicated region
    $region54: #{tpu_custom_call.1} parent=1 // pred_check
      _
    $region55: #{tpu_custom_call.1} parent=1 // pred_check_branch
      %92 = sbr.rel (0) target = $region57
    $region56: #{tpu_custom_call.1} parent=1 // pred_region
      _
    $region57: #{tpu_custom_call.1} parent=1 // pred_fallthru
      _
    // Predicated region
    $region58: #{tpu_custom_call.1} parent=1 // pred_check
      _
    $region59: #{tpu_custom_call.1} parent=1 // pred_check_branch
      %94 = sbr.rel (0) target = $region61
    $region60: #{tpu_custom_call.1} parent=1 // pred_region
      _
    $region61: #{tpu_custom_call.1} parent=1 // pred_fallthru
      _
    // Predicated region
    $region62: #{tpu_custom_call.1} parent=1 // pred_check
      _
    $region63: #{tpu_custom_call.1} parent=1 // pred_check_branch
      %96 = sbr.rel (0) target = $region65
    $region64: #{tpu_custom_call.1} parent=1 // pred_region
      _
    $region65: #{tpu_custom_call.1} parent=1 // pred_fallthru
      _
    // Predicated region
    $region66: #{tpu_custom_call.1} parent=1 // pred_check
      _
    $region67: #{tpu_custom_call.1} parent=1 // pred_check_branch
      %98 = sbr.rel (0) target = $region69
    $region68: #{tpu_custom_call.1} parent=1 // pred_region
      _
    $region69: #{tpu_custom_call.1} parent=1 // pred_fallthru
      _
    // Predicated region
    $region70: #{tpu_custom_call.1} parent=1 // pred_check
      _
    $region71: #{tpu_custom_call.1} parent=1 // pred_check_branch
      %100 = sbr.rel (0) target = $region73
    $region72: #{tpu_custom_call.1} parent=1 // pred_region
      _
    $region73: #{tpu_custom_call.1} parent=1 // pred_fallthru
      _
    // Predicated region
    $region74: #{tpu_custom_call.1} parent=1 // pred_check
      _
    $region75: #{tpu_custom_call.1} parent=1 // pred_check_branch
      %102 = sbr.rel (0) target = $region77
    $region76: #{tpu_custom_call.1} parent=1 // pred_region
      %103 = dma.done [#allocation4], 128
    $region77: #{tpu_custom_call.1} parent=1 // pred_fallthru
      _
    // Predicated region
    $region78: #{tpu_custom_call.1} parent=1 // pred_check
      _
    $region79: #{tpu_custom_call.1} parent=1 // pred_check_branch
      %105 = sbr.rel (0) target = $region81
    $region80: #{tpu_custom_call.1} parent=1 // pred_region
      %106 = dma.done [#allocation6], 4352
    $region81: #{tpu_custom_call.1} parent=1 // pred_fallthru
      _
    // Predicated region
    $region82: #{tpu_custom_call.1} parent=1 // pred_check
      _
    $region83: #{tpu_custom_call.1} parent=1 // pred_check_branch
      %108 = sbr.rel (0) target = $region85
    $region84: #{tpu_custom_call.1} parent=1 // pred_region
      %109 = dma.done [#allocation6], 1536
    $region85: #{tpu_custom_call.1} parent=1 // pred_fallthru
      _
    // Predicated region
    $region86: #{tpu_custom_call.1} parent=1 // pred_check
      _
    $region87: #{tpu_custom_call.1} parent=1 // pred_check_branch
      %111 = sbr.rel (0) target = $region89
    $region88: #{tpu_custom_call.1} parent=1 // pred_region
      %112 = dma.done [#allocation9], 1536
    $region89: #{tpu_custom_call.1} parent=1 // pred_fallthru
      _
    %v113 = vld [vmem:[%s0] sm:$0xff]
    %v114 = vld [vmem:[%s1] sm:$0xff]
    %v115 = vld [vmem:[#allocation3] sm:$0xff]
    %v116 = vld [vmem:[%s9] sm:$0xff]
    %v117 = vld [vmem:[%s9 + $0x8] sm:$0xff]
    %v118 = vld [vmem:[%s9 + $0x10] sm:$0xff]
    %v119 = vld [vmem:[%s9 + $0x18] sm:$0xff]
    %v120 = vld [vmem:[%s9 + $0x20] sm:$0xff]
    %v121 = vld [vmem:[%s9 + $0x28] sm:$0xff]
    %v122 = vld [vmem:[%s9 + $0x30] sm:$0xff]
    %v123 = vld [vmem:[%s9 + $0x38] sm:$0xff]
    %v124 = vld [vmem:[%s9 + $0x40] sm:$0xff]
    %v125 = vld [vmem:[%s9 + $0x48] sm:$0xff]
    %v126 = vld [vmem:[%s9 + $0x50] sm:$0xff]
    %v127 = vld [vmem:[%s9 + $0x58] sm:$0xff]
    %v128 = vld [vmem:[%s9 + $0x60] sm:$0xff]
    %v129 = vld [vmem:[%s9 + $0x68] sm:$0xff]
    %v130 = vld [vmem:[%s9 + $0x70] sm:$0xff]
    %v131 = vld [vmem:[%s10] sm:$0xf]
    %133 = vrot.lane.b32.xlu0 %v113, 29
    %v134 = vpop.permute.xlu0 %133
    %136 = vrot.lane.b32.xlu0 %v113, 58
    %v137 = vpop.permute.xlu0 %136
    %vm139 = vcmask 244736
    %v140 = vsel %vm139, %v113, %v134
    %vm141 = vcmask 490496
    %v142 = vsel %vm141, %v140, %v137
    %144 = vrot.lane.b32.xlu0 %v114, 29
    %v145 = vpop.permute.xlu0 %144
    %147 = vrot.lane.b32.xlu0 %v114, 58
    %v148 = vpop.permute.xlu0 %147
    %v150 = vsel %vm139, %v114, %v145
    %v151 = vsel %vm141, %v150, %v148
    %153 = vrot.lane.b32.xlu0 %v115, 29
    %v154 = vpop.permute.xlu0 %153
    %156 = vrot.lane.b32.xlu0 %v115, 58
    %v157 = vpop.permute.xlu0 %156
    %v159 = vsel %vm139, %v115, %v154
    %v160 = vsel %vm141, %v159, %v157
    %162 = vrot.lane.b32.xlu0 %v151, 90
    %v163 = vpop.permute.xlu0 %162
    %166 = vrot.lane.b32.xlu0 %v160, 52
    %v167 = vpop.permute.xlu0 %166
    %vm169 = vcmask 736256
    %v170 = vsel %vm169, %v142, %v163
    %vm171 = vcmask 424960
    %v172 = vsel %vm171, %v163, %v167
    %v173 = vld [vmem:[#allocation5] sm:$0xff]
    %v174 = vld [vmem:[#allocation5 + $0x8] sm:$0xff]
    %v175 = vld [vmem:[#allocation5 + $0x10] sm:$0xff]
    %v176 = vld [vmem:[#allocation5 + $0x18] sm:$0xff]
    %v177 = vld [vmem:[#allocation5 + $0x20] sm:$0xff]
    %v178 = vld [vmem:[#allocation5 + $0x28] sm:$0xff]
    %v179 = vld [vmem:[#allocation5 + $0x30] sm:$0xff]
    %v180 = vld [vmem:[#allocation5 + $0x38] sm:$0xff]
    %v181 = vld [vmem:[#allocation5 + $0x40] sm:$0xff]
    %v182 = vld [vmem:[#allocation5 + $0x48] sm:$0xff]
    %v183 = vld [vmem:[#allocation5 + $0x50] sm:$0xff]
    %v184 = vld [vmem:[#allocation5 + $0x58] sm:$0xff]
    %v185 = vld [vmem:[#allocation5 + $0x60] sm:$0xff]
    %v186 = vld [vmem:[#allocation5 + $0x68] sm:$0xff]
    %v187 = vld [vmem:[#allocation5 + $0x70] sm:$0xff]
    %v188 = vld [vmem:[#allocation5 + $0x78] sm:$0xff]
    %v189 = vld [vmem:[#allocation5 + $0x80] sm:$0xff]
    %v190 = vld [vmem:[#allocation5 + $0x88] sm:$0xff]
    %v191 = vld [vmem:[#allocation5 + $0x90] sm:$0xff]
    %v192 = vld [vmem:[#allocation5 + $0x98] sm:$0xff]
    %v193 = vld [vmem:[#allocation5 + $0xa0] sm:$0xff]
    %v194 = vld [vmem:[#allocation5 + $0xa8] sm:$0xff]
    %v195 = vld [vmem:[#allocation5 + $0xb0] sm:$0xff]
    %v196 = vld [vmem:[#allocation5 + $0xb8] sm:$0xff]
    %v197 = vld [vmem:[#allocation5 + $0xc0] sm:$0xff]
    %v198 = vld [vmem:[#allocation5 + $0xc8] sm:$0xff]
    %v199 = vld [vmem:[#allocation5 + $0xd0] sm:$0xff]
    %v200 = vld [vmem:[#allocation5 + $0xd8] sm:$0xff]
    %v201 = vld [vmem:[#allocation5 + $0xe0] sm:$0xff]
    %v202 = vld [vmem:[#allocation5 + $0xe8] sm:$0xff]
    %v203 = vld [vmem:[#allocation5 + $0xf0] sm:$0xff]
    %v204 = vld [vmem:[#allocation5 + $0xf8] sm:$0xff]
    %v205 = vld [vmem:[#allocation5 + $0x100] sm:$0xff]
    %v206 = vld [vmem:[#allocation5 + $0x108] sm:$0x3f]
    %vm207 = vcmask 113664
    %v208 = vsel %vm207, %v167, 0
    %vm210 = vcmask 1045504
    %v212 = vsel %vm210, %v206, 0
    %214 = vmatprep.subr.mxu0 0.0
    %215 = vmatpush1.msra.mxu0 %v173
    %216 = vmatprep.subr.mxu0 0.0
    %217 = vmatpush1.msra.mxu0 %v174
    %218 = vmatprep.subr.mxu0 0.0
    %219 = vmatpush1.msra.mxu0 %v175
    %220 = vmatprep.subr.mxu0 0.0
    %221 = vmatpush1.msra.mxu0 %v176
    %222 = vmatprep.subr.mxu0 0.0
    %223 = vmatpush1.msra.mxu0 %v177
    %224 = vmatprep.subr.mxu0 0.0
    %225 = vmatpush1.msra.mxu0 %v178
    %226 = vmatprep.subr.mxu0 0.0
    %227 = vmatpush1.msra.mxu0 %v179
    %228 = vmatprep.subr.mxu0 0.0
    %229 = vmatpush1.msra.mxu0 %v180
    %230 = vmatprep.subr.mxu0 0.0
    %231 = vmatpush1.msra.mxu0 %v181
    %232 = vmatprep.subr.mxu0 0.0
    %233 = vmatpush1.msra.mxu0 %v182
    %234 = vmatprep.subr.mxu0 0.0
    %235 = vmatpush1.msra.mxu0 %v183
    %236 = vmatprep.subr.mxu0 0.0
    %237 = vmatpush1.msra.mxu0 %v184
    %238 = vmatprep.subr.mxu0 0.0
    %239 = vmatpush1.msra.mxu0 %v185
    %240 = vmatprep.subr.mxu0 0.0
    %241 = vmatpush1.msra.mxu0 %v186
    %242 = vmatprep.subr.mxu0 0.0
    %243 = vmatpush1.msra.mxu0 %v187
    %244 = vmatprep.subr.mxu0 0.0
    %245 = vmatpush1.msra.mxu0 %v188
    %246 = vmatprep.subr.mxu0 0.0
    %247 = vmatpush1.msra.mxu0 %v189
    %248 = vmatprep.subr.mxu0 0.0
    %249 = vmatpush1.msra.mxu0 %v190
    %250 = vmatprep.subr.mxu0 0.0
    %251 = vmatpush1.msra.mxu0 %v191
    %252 = vmatprep.subr.mxu0 0.0
    %253 = vmatpush1.msra.mxu0 %v192
    %254 = vmatprep.subr.mxu0 0.0
    %255 = vmatpush1.msra.mxu0 %v193
    %256 = vmatprep.subr.mxu0 0.0
    %257 = vmatpush1.msra.mxu0 %v194
    %258 = vmatprep.subr.mxu0 0.0
    %259 = vmatpush1.msra.mxu0 %v195
    %260 = vmatprep.subr.mxu0 0.0
    %261 = vmatpush1.msra.mxu0 %v196
    %262 = vmatprep.subr.mxu0 0.0
    %263 = vmatpush1.msra.mxu0 %v197
    %264 = vmatprep.subr.mxu0 0.0
    %265 = vmatpush1.msra.mxu0 %v198
    %266 = vmatprep.subr.mxu0 0.0
    %267 = vmatpush1.msra.mxu0 %v199
    %268 = vmatprep.subr.mxu0 0.0
    %269 = vmatpush1.msra.mxu0 %v200
    %270 = vmatprep.subr.mxu0 0.0
    %271 = vmatpush1.msra.mxu0 %v201
    %272 = vmatprep.subr.mxu0 0.0
    %273 = vmatpush1.msra.mxu0 %v202
    %274 = vmatprep.subr.mxu0 0.0
    %275 = vmatpush1.msra.mxu0 %v203
    %276 = vmatprep.subr.mxu0 0.0
    %277 = vmatpush1.msra.mxu0 %v204
    %278 = vmatprep.mubr.f32.mxu0 %v172
    %279 = vmatmul.mubr.f32.gmra.mrb[0].mxu0 %v170
    %v280 = vpop.f32.mrb[0].mxu0
    %v281 = vadd.f32 0.0, %v280
    %v282 = vpop.f32.mrb[0].mxu0
    %283 = vdwg.mxu0
    %284 = vmatprep.subr.mxu0 0.0
    %285 = vmatpush1.msra.mxu0 %v205
    %286 = vmatprep.subr.mxu0 0.0
    %287 = vmatpush1.msra.mxu0 %v212
    %288 = vmatprep.subr.mxu0 0.0
    %289 = vmatpush1.msra.mxu0 0.0
    %290 = vmatprep.subr.mxu0 0.0
    %291 = vmatpush1.msra.mxu0 0.0
    %292 = vmatprep.subr.mxu0 0.0
    %293 = vmatpush1.msra.mxu0 0.0
    %294 = vmatprep.subr.mxu0 0.0
    %295 = vmatpush1.msra.mxu0 0.0
    %296 = vmatprep.subr.mxu0 0.0
    %297 = vmatpush1.msra.mxu0 0.0
    %298 = vmatprep.subr.mxu0 0.0
    %299 = vmatpush1.msra.mxu0 0.0
    %300 = vmatprep.subr.mxu0 0.0
    %301 = vmatpush1.msra.mxu0 0.0
    %302 = vmatprep.subr.mxu0 0.0
    %303 = vmatpush1.msra.mxu0 0.0
    %304 = vmatprep.subr.mxu0 0.0
    %305 = vmatpush1.msra.mxu0 0.0
    %306 = vmatprep.subr.mxu0 0.0
    %307 = vmatpush1.msra.mxu0 0.0
    %308 = vmatprep.subr.mxu0 0.0
    %309 = vmatpush1.msra.mxu0 0.0
    %310 = vmatprep.subr.mxu0 0.0
    %311 = vmatpush1.msra.mxu0 0.0
    %312 = vmatprep.subr.mxu0 0.0
    %313 = vmatpush1.msra.mxu0 0.0
    %314 = vmatprep.subr.mxu0 0.0
    %315 = vmatpush1.msra.mxu0 0.0
    %316 = vmatprep.subr.mxu0 0.0
    %317 = vmatpush1.msra.mxu0 0.0
    %318 = vmatprep.subr.mxu0 0.0
    %319 = vmatpush1.msra.mxu0 0.0
    %320 = vmatprep.subr.mxu0 0.0
    %321 = vmatpush1.msra.mxu0 0.0
    %322 = vmatprep.subr.mxu0 0.0
    %323 = vmatpush1.msra.mxu0 0.0
    %324 = vmatprep.subr.mxu0 0.0
    %325 = vmatpush1.msra.mxu0 0.0
    %326 = vmatprep.subr.mxu0 0.0
    %327 = vmatpush1.msra.mxu0 0.0
    %328 = vmatprep.subr.mxu0 0.0
    %329 = vmatpush1.msra.mxu0 0.0
    %330 = vmatprep.subr.mxu0 0.0
    %331 = vmatpush1.msra.mxu0 0.0
    %332 = vmatprep.subr.mxu0 0.0
    %333 = vmatpush1.msra.mxu0 0.0
    %334 = vmatprep.subr.mxu0 0.0
    %335 = vmatpush1.msra.mxu0 0.0
    %336 = vmatprep.subr.mxu0 0.0
    %337 = vmatpush1.msra.mxu0 0.0
    %338 = vmatprep.subr.mxu0 0.0
    %339 = vmatpush1.msra.mxu0 0.0
    %340 = vmatprep.subr.mxu0 0.0
    %341 = vmatpush1.msra.mxu0 0.0
    %342 = vmatprep.subr.mxu0 0.0
    %343 = vmatpush1.msra.mxu0 0.0
    %344 = vmatprep.subr.mxu0 0.0
    %345 = vmatpush1.msra.mxu0 0.0
    %346 = vmatprep.subr.mxu0 0.0
    %347 = vmatpush1.msra.mxu0 0.0
    %348 = vmatprep.mubr.f32.mxu0 0.0
    %349 = vmatmul.mubr.f32.gmra.mrb[0].mxu0 %v208
    %v350 = vpop.f32.mrb[0].mxu0
    %v351 = vadd.f32 %v281, %v350
    %v352 = vpop.f32.mrb[0].mxu0
    %353 = vdwg.mxu0
    %v354 = vld [vmem:[%s11] sm:$0x1]
    %v355 = vld [vmem:[%s12] sm:$0x1]
    %vm356 = vcmask 982016
    %v358 = vsel %vm356, %v351, 0
    %360 = vmatprep.subr.mxu0 0.0
    %361 = vmatpush1.msra.mxu0 %v116
    %362 = vmatprep.subr.mxu0 0.0
    %363 = vmatpush1.msra.mxu0 %v117
    %364 = vmatprep.subr.mxu0 0.0
    %365 = vmatpush1.msra.mxu0 %v118
    %366 = vmatprep.subr.mxu0 0.0
    %367 = vmatpush1.msra.mxu0 %v119
    %368 = vmatprep.subr.mxu0 0.0
    %369 = vmatpush1.msra.mxu0 %v120
    %370 = vmatprep.subr.mxu0 0.0
    %371 = vmatpush1.msra.mxu0 %v121
    %372 = vmatprep.subr.mxu0 0.0
    %373 = vmatpush1.msra.mxu0 %v122
    %374 = vmatprep.subr.mxu0 0.0
    %375 = vmatpush1.msra.mxu0 %v123
    %376 = vmatprep.subr.mxu0 0.0
    %377 = vmatpush1.msra.mxu0 %v124
    %378 = vmatprep.subr.mxu0 0.0
    %379 = vmatpush1.msra.mxu0 %v125
    %380 = vmatprep.subr.mxu0 0.0
    %381 = vmatpush1.msra.mxu0 %v126
    %382 = vmatprep.subr.mxu0 0.0
    %383 = vmatpush1.msra.mxu0 %v127
    %384 = vmatprep.subr.mxu0 0.0
    %385 = vmatpush1.msra.mxu0 %v128
    %386 = vmatprep.subr.mxu0 0.0
    %387 = vmatpush1.msra.mxu0 %v129
    %388 = vmatprep.subr.mxu0 0.0
    %389 = vmatpush1.msra.mxu0 %v130
    %390 = vmatprep.subr.mxu0 0.0
    %391 = vmatpush1.msra.mxu0 0.0
    %392 = vmatprep.subr.mxu0 0.0
    %393 = vmatpush1.msra.mxu0 0.0
    %394 = vmatprep.subr.mxu0 0.0
    %395 = vmatpush1.msra.mxu0 0.0
    %396 = vmatprep.subr.mxu0 0.0
    %397 = vmatpush1.msra.mxu0 0.0
    %398 = vmatprep.subr.mxu0 0.0
    %399 = vmatpush1.msra.mxu0 0.0
    %400 = vmatprep.subr.mxu0 0.0
    %401 = vmatpush1.msra.mxu0 0.0
    %402 = vmatprep.subr.mxu0 0.0
    %403 = vmatpush1.msra.mxu0 0.0
    %404 = vmatprep.subr.mxu0 0.0
    %405 = vmatpush1.msra.mxu0 0.0
    %406 = vmatprep.subr.mxu0 0.0
    %407 = vmatpush1.msra.mxu0 0.0
    %408 = vmatprep.subr.mxu0 0.0
    %409 = vmatpush1.msra.mxu0 0.0
    %410 = vmatprep.subr.mxu0 0.0
    %411 = vmatpush1.msra.mxu0 0.0
    %412 = vmatprep.subr.mxu0 0.0
    %413 = vmatpush1.msra.mxu0 0.0
    %414 = vmatprep.subr.mxu0 0.0
    %415 = vmatpush1.msra.mxu0 0.0
    %416 = vmatprep.subr.mxu0 0.0
    %417 = vmatpush1.msra.mxu0 0.0
    %418 = vmatprep.subr.mxu0 0.0
    %419 = vmatpush1.msra.mxu0 0.0
    %420 = vmatprep.subr.mxu0 0.0
    %421 = vmatpush1.msra.mxu0 0.0
    %422 = vmatprep.subr.mxu0 0.0
    %423 = vmatpush1.msra.mxu0 0.0
    %424 = vmatprep.mubr.f32.mxu0 0.0
    %425 = vmatmul.mubr.f32.gmra.mrb[0].mxu0 %v358
    %v426 = vpop.f32.mrb[0].mxu0
    %v427 = vadd.f32 0.0, %v426
    %v428 = vpop.f32.mrb[0].mxu0
    %429 = vdwg.mxu0
    %vm430 = vcmask 31744
    %v431 = vsel %vm430, %v427, 0.0
    %v432 = vrot.slane %v431, 4
    %v433 = vadd.f32 %v431, %v432
    %v434 = vrot.slane %v433, 2
    %v435 = vadd.f32 %v433, %v434
    %v436 = vrot.slane %v435, 1
    %v437 = vadd.f32 %v435, %v436
    %v438 = vmul.f32 %v437, 0.004166667
    %v440 = vsel %vm430, %v438, 0
    %vm442 = vcmask 1043456
    %v444 = vsel %vm442, %v131, 0
    %446 = vmatprep.subr.mxu0 0.0
    %447 = vmatpush1.msra.mxu0 %v444
    %448 = vmatprep.subr.mxu0 0.0
    %449 = vmatpush1.msra.mxu0 0.0
    %450 = vmatprep.subr.mxu0 0.0
    %451 = vmatpush1.msra.mxu0 0.0
    %452 = vmatprep.subr.mxu0 0.0
    %453 = vmatpush1.msra.mxu0 0.0
    %454 = vmatprep.subr.mxu0 0.0
    %455 = vmatpush1.msra.mxu0 0.0
    %456 = vmatprep.subr.mxu0 0.0
    %457 = vmatpush1.msra.mxu0 0.0
    %458 = vmatprep.subr.mxu0 0.0
    %459 = vmatpush1.msra.mxu0 0.0
    %460 = vmatprep.subr.mxu0 0.0
    %461 = vmatpush1.msra.mxu0 0.0
    %462 = vmatprep.subr.mxu0 0.0
    %463 = vmatpush1.msra.mxu0 0.0
    %464 = vmatprep.subr.mxu0 0.0
    %465 = vmatpush1.msra.mxu0 0.0
    %466 = vmatprep.subr.mxu0 0.0
    %467 = vmatpush1.msra.mxu0 0.0
    %468 = vmatprep.subr.mxu0 0.0
    %469 = vmatpush1.msra.mxu0 0.0
    %470 = vmatprep.subr.mxu0 0.0
    %471 = vmatpush1.msra.mxu0 0.0
    %472 = vmatprep.subr.mxu0 0.0
    %473 = vmatpush1.msra.mxu0 0.0
    %474 = vmatprep.subr.mxu0 0.0
    %475 = vmatpush1.msra.mxu0 0.0
    %476 = vmatprep.subr.mxu0 0.0
    %477 = vmatpush1.msra.mxu0 0.0
    %478 = vmatprep.subr.mxu0 0.0
    %479 = vmatpush1.msra.mxu0 0.0
    %480 = vmatprep.subr.mxu0 0.0
    %481 = vmatpush1.msra.mxu0 0.0
    %482 = vmatprep.subr.mxu0 0.0
    %483 = vmatpush1.msra.mxu0 0.0
    %484 = vmatprep.subr.mxu0 0.0
    %485 = vmatpush1.msra.mxu0 0.0
    %486 = vmatprep.subr.mxu0 0.0
    %487 = vmatpush1.msra.mxu0 0.0
    %488 = vmatprep.subr.mxu0 0.0
    %489 = vmatpush1.msra.mxu0 0.0
    %490 = vmatprep.subr.mxu0 0.0
    %491 = vmatpush1.msra.mxu0 0.0
    %492 = vmatprep.subr.mxu0 0.0
    %493 = vmatpush1.msra.mxu0 0.0
    %494 = vmatprep.subr.mxu0 0.0
    %495 = vmatpush1.msra.mxu0 0.0
    %496 = vmatprep.subr.mxu0 0.0
    %497 = vmatpush1.msra.mxu0 0.0
    %498 = vmatprep.subr.mxu0 0.0
    %499 = vmatpush1.msra.mxu0 0.0
    %500 = vmatprep.subr.mxu0 0.0
    %501 = vmatpush1.msra.mxu0 0.0
    %502 = vmatprep.subr.mxu0 0.0
    %503 = vmatpush1.msra.mxu0 0.0
    %504 = vmatprep.subr.mxu0 0.0
    %505 = vmatpush1.msra.mxu0 0.0
    %506 = vmatprep.subr.mxu0 0.0
    %507 = vmatpush1.msra.mxu0 0.0
    %508 = vmatprep.subr.mxu0 0.0
    %509 = vmatpush1.msra.mxu0 0.0
    %510 = vmatprep.mubr.f32.mxu0 0.0
    %511 = vmatmul.mubr.f32.gmra.mrb[0].mxu0 %v440
    %v512 = vpop.f32.mrb[0].mxu0
    %v513 = vadd.f32 0.0, %v512
    %v514 = vpop.f32.mrb[0].mxu0
    %515 = vdwg.mxu0
    %v516 = vlaneseq
    %v517 = vshrl.u32 %v516, 7
    %v518 = vsub.s32 0, %v517
    %v519 = vrot.slane %v513, %v518
    %v520 = vsub.f32 %v351, %v519
    %v521 = vmul.f32 %v520, %v520
    %v523 = vsel %vm356, %v521, 0
    %525 = vmatprep.subr.mxu0 0.0
    %526 = vmatpush1.msra.mxu0 %v116
    %527 = vmatprep.subr.mxu0 0.0
    %528 = vmatpush1.msra.mxu0 %v117
    %529 = vmatprep.subr.mxu0 0.0
    %530 = vmatpush1.msra.mxu0 %v118
    %531 = vmatprep.subr.mxu0 0.0
    %532 = vmatpush1.msra.mxu0 %v119
    %533 = vmatprep.subr.mxu0 0.0
    %534 = vmatpush1.msra.mxu0 %v120
    %535 = vmatprep.subr.mxu0 0.0
    %536 = vmatpush1.msra.mxu0 %v121
    %537 = vmatprep.subr.mxu0 0.0
    %538 = vmatpush1.msra.mxu0 %v122
    %539 = vmatprep.subr.mxu0 0.0
    %540 = vmatpush1.msra.mxu0 %v123
    %541 = vmatprep.subr.mxu0 0.0
    %542 = vmatpush1.msra.mxu0 %v124
    %543 = vmatprep.subr.mxu0 0.0
    %544 = vmatpush1.msra.mxu0 %v125
    %545 = vmatprep.subr.mxu0 0.0
    %546 = vmatpush1.msra.mxu0 %v126
    %547 = vmatprep.subr.mxu0 0.0
    %548 = vmatpush1.msra.mxu0 %v127
    %549 = vmatprep.subr.mxu0 0.0
    %550 = vmatpush1.msra.mxu0 %v128
    %551 = vmatprep.subr.mxu0 0.0
    %552 = vmatpush1.msra.mxu0 %v129
    %553 = vmatprep.subr.mxu0 0.0
    %554 = vmatpush1.msra.mxu0 %v130
    %555 = vmatprep.subr.mxu0 0.0
    %556 = vmatpush1.msra.mxu0 0.0
    %557 = vmatprep.subr.mxu0 0.0
    %558 = vmatpush1.msra.mxu0 0.0
    %559 = vmatprep.subr.mxu0 0.0
    %560 = vmatpush1.msra.mxu0 0.0
    %561 = vmatprep.subr.mxu0 0.0
    %562 = vmatpush1.msra.mxu0 0.0
    %563 = vmatprep.subr.mxu0 0.0
    %564 = vmatpush1.msra.mxu0 0.0
    %565 = vmatprep.subr.mxu0 0.0
    %566 = vmatpush1.msra.mxu0 0.0
    %567 = vmatprep.subr.mxu0 0.0
    %568 = vmatpush1.msra.mxu0 0.0
    %569 = vmatprep.subr.mxu0 0.0
    %570 = vmatpush1.msra.mxu0 0.0
    %571 = vmatprep.subr.mxu0 0.0
    %572 = vmatpush1.msra.mxu0 0.0
    %573 = vmatprep.subr.mxu0 0.0
    %574 = vmatpush1.msra.mxu0 0.0
    %575 = vmatprep.subr.mxu0 0.0
    %576 = vmatpush1.msra.mxu0 0.0
    %577 = vmatprep.subr.mxu0 0.0
    %578 = vmatpush1.msra.mxu0 0.0
    %579 = vmatprep.subr.mxu0 0.0
    %580 = vmatpush1.msra.mxu0 0.0
    %581 = vmatprep.subr.mxu0 0.0
    %582 = vmatpush1.msra.mxu0 0.0
    %583 = vmatprep.subr.mxu0 0.0
    %584 = vmatpush1.msra.mxu0 0.0
    %585 = vmatprep.subr.mxu0 0.0
    %586 = vmatpush1.msra.mxu0 0.0
    %587 = vmatprep.subr.mxu0 0.0
    %588 = vmatpush1.msra.mxu0 0.0
    %589 = vmatprep.mubr.f32.mxu0 0.0
    %590 = vmatmul.mubr.f32.gmra.mrb[0].mxu0 %v523
    %v591 = vpop.f32.mrb[0].mxu0
    %v592 = vadd.f32 0.0, %v591
    %v593 = vpop.f32.mrb[0].mxu0
    %594 = vdwg.mxu0
    %v595 = vsel %vm430, %v592, 0.0
    %v596 = vrot.slane %v595, 4
    %v597 = vadd.f32 %v595, %v596
    %v598 = vrot.slane %v597, 2
    %v599 = vadd.f32 %v597, %v598
    %v600 = vrot.slane %v599, 1
    %v601 = vadd.f32 %v599, %v600
    %v602 = vmul.f32 %v601, 0.004166667
    %v603 = vadd.f32 %v602, 1e-05
    %v604 = vrsqrt.pop %v603
    %v605 = vmul.f32 %v354, %v604
    %v607 = vsel %vm430, %v605, 0
    %609 = vmatprep.subr.mxu0 0.0
    %610 = vmatpush1.msra.mxu0 %v444
    %611 = vmatprep.subr.mxu0 0.0
    %612 = vmatpush1.msra.mxu0 0.0
    %613 = vmatprep.subr.mxu0 0.0
    %614 = vmatpush1.msra.mxu0 0.0
    %615 = vmatprep.subr.mxu0 0.0
    %616 = vmatpush1.msra.mxu0 0.0
    %617 = vmatprep.subr.mxu0 0.0
    %618 = vmatpush1.msra.mxu0 0.0
    %619 = vmatprep.subr.mxu0 0.0
    %620 = vmatpush1.msra.mxu0 0.0
    %621 = vmatprep.subr.mxu0 0.0
    %622 = vmatpush1.msra.mxu0 0.0
    %623 = vmatprep.subr.mxu0 0.0
    %624 = vmatpush1.msra.mxu0 0.0
    %625 = vmatprep.subr.mxu0 0.0
    %626 = vmatpush1.msra.mxu0 0.0
    %627 = vmatprep.subr.mxu0 0.0
    %628 = vmatpush1.msra.mxu0 0.0
    %629 = vmatprep.subr.mxu0 0.0
    %630 = vmatpush1.msra.mxu0 0.0
    %631 = vmatprep.subr.mxu0 0.0
    %632 = vmatpush1.msra.mxu0 0.0
    %633 = vmatprep.subr.mxu0 0.0
    %634 = vmatpush1.msra.mxu0 0.0
    %635 = vmatprep.subr.mxu0 0.0
    %636 = vmatpush1.msra.mxu0 0.0
    %637 = vmatprep.subr.mxu0 0.0
    %638 = vmatpush1.msra.mxu0 0.0
    %639 = vmatprep.subr.mxu0 0.0
    %640 = vmatpush1.msra.mxu0 0.0
    %641 = vmatprep.subr.mxu0 0.0
    %642 = vmatpush1.msra.mxu0 0.0
    %643 = vmatprep.subr.mxu0 0.0
    %644 = vmatpush1.msra.mxu0 0.0
    %645 = vmatprep.subr.mxu0 0.0
    %646 = vmatpush1.msra.mxu0 0.0
    %647 = vmatprep.subr.mxu0 0.0
    %648 = vmatpush1.msra.mxu0 0.0
    %649 = vmatprep.subr.mxu0 0.0
    %650 = vmatpush1.msra.mxu0 0.0
    %651 = vmatprep.subr.mxu0 0.0
    %652 = vmatpush1.msra.mxu0 0.0
    %653 = vmatprep.subr.mxu0 0.0
    %654 = vmatpush1.msra.mxu0 0.0
    %655 = vmatprep.subr.mxu0 0.0
    %656 = vmatpush1.msra.mxu0 0.0
    %657 = vmatprep.subr.mxu0 0.0
    %658 = vmatpush1.msra.mxu0 0.0
    %659 = vmatprep.subr.mxu0 0.0
    %660 = vmatpush1.msra.mxu0 0.0
    %661 = vmatprep.subr.mxu0 0.0
    %662 = vmatpush1.msra.mxu0 0.0
    %663 = vmatprep.subr.mxu0 0.0
    %664 = vmatpush1.msra.mxu0 0.0
    %665 = vmatprep.subr.mxu0 0.0
    %666 = vmatpush1.msra.mxu0 0.0
    %667 = vmatprep.subr.mxu0 0.0
    %668 = vmatpush1.msra.mxu0 0.0
    %669 = vmatprep.subr.mxu0 0.0
    %670 = vmatpush1.msra.mxu0 0.0
    %671 = vmatprep.subr.mxu0 0.0
    %672 = vmatpush1.msra.mxu0 0.0
    %673 = vmatprep.mubr.f32.mxu0 0.0
    %674 = vmatmul.mubr.f32.gmra.mrb[0].mxu0 %v607
    %v675 = vpop.f32.mrb[0].mxu0
    %v676 = vadd.f32 0.0, %v675
    %v677 = vpop.f32.mrb[0].mxu0
    %678 = vdwg.mxu0
    %v679 = vlaneseq
    %v680 = vshrl.u32 %v679, 7
    %v681 = vsub.s32 0, %v680
    %v682 = vrot.slane %v676, %v681
    %v683 = vmul.f32 %v520, %v682
    %v685 = vlaneseq
    %v686 = vshrl.u32 %v685, 7
    %v687 = vsub.s32 0, %v686
    %v688 = vrot.slane %v355, %v687
    %v690 = vadd.f32 %v683, %v688
    %v691 = vmax.f32 %v690, 0.0
    %v692 = vld [vmem:[#allocation7] sm:$0xff]
    %v693 = vld [vmem:[#allocation7 + $0x8] sm:$0xff]
    %v694 = vld [vmem:[#allocation7 + $0x10] sm:$0xff]
    %v695 = vld [vmem:[#allocation7 + $0x18] sm:$0xff]
    %v696 = vld [vmem:[#allocation7 + $0x20] sm:$0xff]
    %v697 = vld [vmem:[#allocation7 + $0x28] sm:$0xff]
    %v698 = vld [vmem:[#allocation7 + $0x30] sm:$0xff]
    %v699 = vld [vmem:[#allocation7 + $0x38] sm:$0xff]
    %v700 = vld [vmem:[#allocation7 + $0x40] sm:$0xff]
    %v701 = vld [vmem:[#allocation7 + $0x48] sm:$0xff]
    %v702 = vld [vmem:[#allocation7 + $0x50] sm:$0xff]
    %v703 = vld [vmem:[#allocation7 + $0x58] sm:$0x3]
    %v704 = vsel %vm169, %v151, 0
    %vm706 = vcmask 1041408
    %v708 = vsel %vm706, %v703, 0
    %710 = vmatprep.subr.mxu0 0.0
    %711 = vmatpush1.msra.mxu0 %v692
    %712 = vmatprep.subr.mxu0 0.0
    %713 = vmatpush1.msra.mxu0 %v693
    %714 = vmatprep.subr.mxu0 0.0
    %715 = vmatpush1.msra.mxu0 %v694
    %716 = vmatprep.subr.mxu0 0.0
    %717 = vmatpush1.msra.mxu0 %v695
    %718 = vmatprep.subr.mxu0 0.0
    %719 = vmatpush1.msra.mxu0 %v696
    %720 = vmatprep.subr.mxu0 0.0
    %721 = vmatpush1.msra.mxu0 %v697
    %722 = vmatprep.subr.mxu0 0.0
    %723 = vmatpush1.msra.mxu0 %v698
    %724 = vmatprep.subr.mxu0 0.0
    %725 = vmatpush1.msra.mxu0 %v699
    %726 = vmatprep.subr.mxu0 0.0
    %727 = vmatpush1.msra.mxu0 %v700
    %728 = vmatprep.subr.mxu0 0.0
    %729 = vmatpush1.msra.mxu0 %v701
    %730 = vmatprep.subr.mxu0 0.0
    %731 = vmatpush1.msra.mxu0 %v702
    %732 = vmatprep.subr.mxu0 0.0
    %733 = vmatpush1.msra.mxu0 %v708
    %734 = vmatprep.subr.mxu0 0.0
    %735 = vmatpush1.msra.mxu0 0.0
    %736 = vmatprep.subr.mxu0 0.0
    %737 = vmatpush1.msra.mxu0 0.0
    %738 = vmatprep.subr.mxu0 0.0
    %739 = vmatpush1.msra.mxu0 0.0
    %740 = vmatprep.subr.mxu0 0.0
    %741 = vmatpush1.msra.mxu0 0.0
    %742 = vmatprep.subr.mxu0 0.0
    %743 = vmatpush1.msra.mxu0 0.0
    %744 = vmatprep.subr.mxu0 0.0
    %745 = vmatpush1.msra.mxu0 0.0
    %746 = vmatprep.subr.mxu0 0.0
    %747 = vmatpush1.msra.mxu0 0.0
    %748 = vmatprep.subr.mxu0 0.0
    %749 = vmatpush1.msra.mxu0 0.0
    %750 = vmatprep.subr.mxu0 0.0
    %751 = vmatpush1.msra.mxu0 0.0
    %752 = vmatprep.subr.mxu0 0.0
    %753 = vmatpush1.msra.mxu0 0.0
    %754 = vmatprep.subr.mxu0 0.0
    %755 = vmatpush1.msra.mxu0 0.0
    %756 = vmatprep.subr.mxu0 0.0
    %757 = vmatpush1.msra.mxu0 0.0
    %758 = vmatprep.subr.mxu0 0.0
    %759 = vmatpush1.msra.mxu0 0.0
    %760 = vmatprep.subr.mxu0 0.0
    %761 = vmatpush1.msra.mxu0 0.0
    %762 = vmatprep.subr.mxu0 0.0
    %763 = vmatpush1.msra.mxu0 0.0
    %764 = vmatprep.subr.mxu0 0.0
    %765 = vmatpush1.msra.mxu0 0.0
    %766 = vmatprep.subr.mxu0 0.0
    %767 = vmatpush1.msra.mxu0 0.0
    %768 = vmatprep.subr.mxu0 0.0
    %769 = vmatpush1.msra.mxu0 0.0
    %770 = vmatprep.subr.mxu0 0.0
    %771 = vmatpush1.msra.mxu0 0.0
    %772 = vmatprep.subr.mxu0 0.0
    %773 = vmatpush1.msra.mxu0 0.0
    %774 = vmatprep.mubr.f32.mxu0 0.0
    %775 = vmatmul.mubr.f32.gmra.mrb[0].mxu0 %v704
    %v776 = vpop.f32.mrb[0].mxu0
    %v777 = vadd.f32 0.0, %v776
    %v778 = vpop.f32.mrb[0].mxu0
    %779 = vdwg.mxu0
    %v780 = vld [vmem:[%s13] sm:$0x1]
    %v781 = vld [vmem:[%s14] sm:$0x1]
    %v782 = vld [vmem:[%s3] sm:$0xff]
    %784 = vrot.lane.b32.xlu0 %v782, 29
    %v785 = vpop.permute.xlu0 %784
    %787 = vrot.lane.b32.xlu0 %v782, 58
    %v788 = vpop.permute.xlu0 %787
    %v790 = vsel %vm139, %v782, %v785
    %v791 = vsel %vm141, %v790, %v788
    %v792 = vld [vmem:[%s6] sm:$0xff]
    %v793 = vld [vmem:[%s6 + $0x8] sm:$0xff]
    %v794 = vld [vmem:[%s6 + $0x10] sm:$0xff]
    %v795 = vld [vmem:[%s6 + $0x18] sm:$0xff]
    %v796 = vld [vmem:[%s6 + $0x20] sm:$0xff]
    %v797 = vld [vmem:[%s6 + $0x28] sm:$0xff]
    %v798 = vld [vmem:[%s6 + $0x30] sm:$0xff]
    %v799 = vld [vmem:[%s6 + $0x38] sm:$0xff]
    %v800 = vld [vmem:[%s6 + $0x40] sm:$0xff]
    %v801 = vld [vmem:[%s6 + $0x48] sm:$0xff]
    %v802 = vld [vmem:[%s6 + $0x50] sm:$0xff]
    %v803 = vld [vmem:[%s6 + $0x58] sm:$0x3]
    %v805 = vsel %vm169, %v791, 0
    %v808 = vsel %vm706, %v803, 0
    %810 = vmatprep.subr.mxu0 0.0
    %811 = vmatpush1.msra.mxu0 %v792
    %812 = vmatprep.subr.mxu0 0.0
    %813 = vmatpush1.msra.mxu0 %v793
    %814 = vmatprep.subr.mxu0 0.0
    %815 = vmatpush1.msra.mxu0 %v794
    %816 = vmatprep.subr.mxu0 0.0
    %817 = vmatpush1.msra.mxu0 %v795
    %818 = vmatprep.subr.mxu0 0.0
    %819 = vmatpush1.msra.mxu0 %v796
    %820 = vmatprep.subr.mxu0 0.0
    %821 = vmatpush1.msra.mxu0 %v797
    %822 = vmatprep.subr.mxu0 0.0
    %823 = vmatpush1.msra.mxu0 %v798
    %824 = vmatprep.subr.mxu0 0.0
    %825 = vmatpush1.msra.mxu0 %v799
    %826 = vmatprep.subr.mxu0 0.0
    %827 = vmatpush1.msra.mxu0 %v800
    %828 = vmatprep.subr.mxu0 0.0
    %829 = vmatpush1.msra.mxu0 %v801
    %830 = vmatprep.subr.mxu0 0.0
    %831 = vmatpush1.msra.mxu0 %v802
    %832 = vmatprep.subr.mxu0 0.0
    %833 = vmatpush1.msra.mxu0 %v808
    %834 = vmatprep.subr.mxu0 0.0
    %835 = vmatpush1.msra.mxu0 0.0
    %836 = vmatprep.subr.mxu0 0.0
    %837 = vmatpush1.msra.mxu0 0.0
    %838 = vmatprep.subr.mxu0 0.0
    %839 = vmatpush1.msra.mxu0 0.0
    %840 = vmatprep.subr.mxu0 0.0
    %841 = vmatpush1.msra.mxu0 0.0
    %842 = vmatprep.subr.mxu0 0.0
    %843 = vmatpush1.msra.mxu0 0.0
    %844 = vmatprep.subr.mxu0 0.0
    %845 = vmatpush1.msra.mxu0 0.0
    %846 = vmatprep.subr.mxu0 0.0
    %847 = vmatpush1.msra.mxu0 0.0
    %848 = vmatprep.subr.mxu0 0.0
    %849 = vmatpush1.msra.mxu0 0.0
    %850 = vmatprep.subr.mxu0 0.0
    %851 = vmatpush1.msra.mxu0 0.0
    %852 = vmatprep.subr.mxu0 0.0
    %853 = vmatpush1.msra.mxu0 0.0
    %854 = vmatprep.subr.mxu0 0.0
    %855 = vmatpush1.msra.mxu0 0.0
    %856 = vmatprep.subr.mxu0 0.0
    %857 = vmatpush1.msra.mxu0 0.0
    %858 = vmatprep.subr.mxu0 0.0
    %859 = vmatpush1.msra.mxu0 0.0
    %860 = vmatprep.subr.mxu0 0.0
    %861 = vmatpush1.msra.mxu0 0.0
    %862 = vmatprep.subr.mxu0 0.0
    %863 = vmatpush1.msra.mxu0 0.0
    %864 = vmatprep.subr.mxu0 0.0
    %865 = vmatpush1.msra.mxu0 0.0
    %866 = vmatprep.subr.mxu0 0.0
    %867 = vmatpush1.msra.mxu0 0.0
    %868 = vmatprep.subr.mxu0 0.0
    %869 = vmatpush1.msra.mxu0 0.0
    %870 = vmatprep.subr.mxu0 0.0
    %871 = vmatpush1.msra.mxu0 0.0
    %872 = vmatprep.subr.mxu0 0.0
    %873 = vmatpush1.msra.mxu0 0.0
    %874 = vmatprep.mubr.f32.mxu0 0.0
    %875 = vmatmul.mubr.f32.gmra.mrb[0].mxu0 %v805
    %v876 = vpop.f32.mrb[0].mxu0
    %v877 = vadd.f32 0.0, %v876
    %v878 = vpop.f32.mrb[0].mxu0
    %879 = vdwg.mxu0
    %v880 = vadd.f32 %v777, %v877
    %v881 = vld [vmem:[%s4] sm:$0xff]
    %883 = vrot.lane.b32.xlu0 %v881, 29
    %v884 = vpop.permute.xlu0 %883
    %886 = vrot.lane.b32.xlu0 %v881, 58
    %v887 = vpop.permute.xlu0 %886
    %v889 = vsel %vm139, %v881, %v884
    %v890 = vsel %vm141, %v889, %v887
    %v891 = vld [vmem:[#allocation8] sm:$0xff]
    %v892 = vld [vmem:[#allocation8 + $0x8] sm:$0xff]
    %v893 = vld [vmem:[#allocation8 + $0x10] sm:$0xff]
    %v894 = vld [vmem:[#allocation8 + $0x18] sm:$0xff]
    %v895 = vld [vmem:[#allocation8 + $0x20] sm:$0xff]
    %v896 = vld [vmem:[#allocation8 + $0x28] sm:$0xff]
    %v897 = vld [vmem:[#allocation8 + $0x30] sm:$0xff]
    %v898 = vld [vmem:[#allocation8 + $0x38] sm:$0xff]
    %v899 = vld [vmem:[#allocation8 + $0x40] sm:$0xff]
    %v900 = vld [vmem:[#allocation8 + $0x48] sm:$0xff]
    %v901 = vld [vmem:[#allocation8 + $0x50] sm:$0xff]
    %v902 = vld [vmem:[#allocation8 + $0x58] sm:$0x3]
    %v904 = vsel %vm169, %v890, 0
    %v907 = vsel %vm706, %v902, 0
    %909 = vmatprep.subr.mxu0 0.0
    %910 = vmatpush1.msra.mxu0 %v891
    %911 = vmatprep.subr.mxu0 0.0
    %912 = vmatpush1.msra.mxu0 %v892
    %913 = vmatprep.subr.mxu0 0.0
    %914 = vmatpush1.msra.mxu0 %v893
    %915 = vmatprep.subr.mxu0 0.0
    %916 = vmatpush1.msra.mxu0 %v894
    %917 = vmatprep.subr.mxu0 0.0
    %918 = vmatpush1.msra.mxu0 %v895
    %919 = vmatprep.subr.mxu0 0.0
    %920 = vmatpush1.msra.mxu0 %v896
    %921 = vmatprep.subr.mxu0 0.0
    %922 = vmatpush1.msra.mxu0 %v897
    %923 = vmatprep.subr.mxu0 0.0
    %924 = vmatpush1.msra.mxu0 %v898
    %925 = vmatprep.subr.mxu0 0.0
    %926 = vmatpush1.msra.mxu0 %v899
    %927 = vmatprep.subr.mxu0 0.0
    %928 = vmatpush1.msra.mxu0 %v900
    %929 = vmatprep.subr.mxu0 0.0
    %930 = vmatpush1.msra.mxu0 %v901
    %931 = vmatprep.subr.mxu0 0.0
    %932 = vmatpush1.msra.mxu0 %v907
    %933 = vmatprep.subr.mxu0 0.0
    %934 = vmatpush1.msra.mxu0 0.0
    %935 = vmatprep.subr.mxu0 0.0
    %936 = vmatpush1.msra.mxu0 0.0
    %937 = vmatprep.subr.mxu0 0.0
    %938 = vmatpush1.msra.mxu0 0.0
    %939 = vmatprep.subr.mxu0 0.0
    %940 = vmatpush1.msra.mxu0 0.0
    %941 = vmatprep.subr.mxu0 0.0
    %942 = vmatpush1.msra.mxu0 0.0
    %943 = vmatprep.subr.mxu0 0.0
    %944 = vmatpush1.msra.mxu0 0.0
    %945 = vmatprep.subr.mxu0 0.0
    %946 = vmatpush1.msra.mxu0 0.0
    %947 = vmatprep.subr.mxu0 0.0
    %948 = vmatpush1.msra.mxu0 0.0
    %949 = vmatprep.subr.mxu0 0.0
    %950 = vmatpush1.msra.mxu0 0.0
    %951 = vmatprep.subr.mxu0 0.0
    %952 = vmatpush1.msra.mxu0 0.0
    %953 = vmatprep.subr.mxu0 0.0
    %954 = vmatpush1.msra.mxu0 0.0
    %955 = vmatprep.subr.mxu0 0.0
    %956 = vmatpush1.msra.mxu0 0.0
    %957 = vmatprep.subr.mxu0 0.0
    %958 = vmatpush1.msra.mxu0 0.0
    %959 = vmatprep.subr.mxu0 0.0
    %960 = vmatpush1.msra.mxu0 0.0
    %961 = vmatprep.subr.mxu0 0.0
    %962 = vmatpush1.msra.mxu0 0.0
    %963 = vmatprep.subr.mxu0 0.0
    %964 = vmatpush1.msra.mxu0 0.0
    %965 = vmatprep.subr.mxu0 0.0
    %966 = vmatpush1.msra.mxu0 0.0
    %967 = vmatprep.subr.mxu0 0.0
    %968 = vmatpush1.msra.mxu0 0.0
    %969 = vmatprep.subr.mxu0 0.0
    %970 = vmatpush1.msra.mxu0 0.0
    %971 = vmatprep.subr.mxu0 0.0
    %972 = vmatpush1.msra.mxu0 0.0
    %973 = vmatprep.mubr.f32.mxu0 0.0
    %974 = vmatmul.mubr.f32.gmra.mrb[0].mxu0 %v904
    %v975 = vpop.f32.mrb[0].mxu0
    %v976 = vadd.f32 0.0, %v975
    %v977 = vpop.f32.mrb[0].mxu0
    %978 = vdwg.mxu0
    %v979 = vadd.f32 %v880, %v976
    %v981 = vsel %vm356, %v979, 0
    %983 = vmatprep.subr.mxu0 0.0
    %984 = vmatpush1.msra.mxu0 %v116
    %985 = vmatprep.subr.mxu0 0.0
    %986 = vmatpush1.msra.mxu0 %v117
    %987 = vmatprep.subr.mxu0 0.0
    %988 = vmatpush1.msra.mxu0 %v118
    %989 = vmatprep.subr.mxu0 0.0
    %990 = vmatpush1.msra.mxu0 %v119
    %991 = vmatprep.subr.mxu0 0.0
    %992 = vmatpush1.msra.mxu0 %v120
    %993 = vmatprep.subr.mxu0 0.0
    %994 = vmatpush1.msra.mxu0 %v121
    %995 = vmatprep.subr.mxu0 0.0
    %996 = vmatpush1.msra.mxu0 %v122
    %997 = vmatprep.subr.mxu0 0.0
    %998 = vmatpush1.msra.mxu0 %v123
    %999 = vmatprep.subr.mxu0 0.0
    %1000 = vmatpush1.msra.mxu0 %v124
    %1001 = vmatprep.subr.mxu0 0.0
    %1002 = vmatpush1.msra.mxu0 %v125
    %1003 = vmatprep.subr.mxu0 0.0
    %1004 = vmatpush1.msra.mxu0 %v126
    %1005 = vmatprep.subr.mxu0 0.0
    %1006 = vmatpush1.msra.mxu0 %v127
    %1007 = vmatprep.subr.mxu0 0.0
    %1008 = vmatpush1.msra.mxu0 %v128
    %1009 = vmatprep.subr.mxu0 0.0
    %1010 = vmatpush1.msra.mxu0 %v129
    %1011 = vmatprep.subr.mxu0 0.0
    %1012 = vmatpush1.msra.mxu0 %v130
    %1013 = vmatprep.subr.mxu0 0.0
    %1014 = vmatpush1.msra.mxu0 0.0
    %1015 = vmatprep.subr.mxu0 0.0
    %1016 = vmatpush1.msra.mxu0 0.0
    %1017 = vmatprep.subr.mxu0 0.0
    %1018 = vmatpush1.msra.mxu0 0.0
    %1019 = vmatprep.subr.mxu0 0.0
    %1020 = vmatpush1.msra.mxu0 0.0
    %1021 = vmatprep.subr.mxu0 0.0
    %1022 = vmatpush1.msra.mxu0 0.0
    %1023 = vmatprep.subr.mxu0 0.0
    %1024 = vmatpush1.msra.mxu0 0.0
    %1025 = vmatprep.subr.mxu0 0.0
    %1026 = vmatpush1.msra.mxu0 0.0
    %1027 = vmatprep.subr.mxu0 0.0
    %1028 = vmatpush1.msra.mxu0 0.0
    %1029 = vmatprep.subr.mxu0 0.0
    %1030 = vmatpush1.msra.mxu0 0.0
    %1031 = vmatprep.subr.mxu0 0.0
    %1032 = vmatpush1.msra.mxu0 0.0
    %1033 = vmatprep.subr.mxu0 0.0
    %1034 = vmatpush1.msra.mxu0 0.0
    %1035 = vmatprep.subr.mxu0 0.0
    %1036 = vmatpush1.msra.mxu0 0.0
    %1037 = vmatprep.subr.mxu0 0.0
    %1038 = vmatpush1.msra.mxu0 0.0
    %1039 = vmatprep.subr.mxu0 0.0
    %1040 = vmatpush1.msra.mxu0 0.0
    %1041 = vmatprep.subr.mxu0 0.0
    %1042 = vmatpush1.msra.mxu0 0.0
    %1043 = vmatprep.subr.mxu0 0.0
    %1044 = vmatpush1.msra.mxu0 0.0
    %1045 = vmatprep.subr.mxu0 0.0
    %1046 = vmatpush1.msra.mxu0 0.0
    %1047 = vmatprep.mubr.f32.mxu0 0.0
    %1048 = vmatmul.mubr.f32.gmra.mrb[0].mxu0 %v981
    %v1049 = vpop.f32.mrb[0].mxu0
    %v1050 = vadd.f32 0.0, %v1049
    %v1051 = vpop.f32.mrb[0].mxu0
    %1052 = vdwg.mxu0
    %v1053 = vsel %vm430, %v1050, 0.0
    %v1054 = vrot.slane %v1053, 4
    %v1055 = vadd.f32 %v1053, %v1054
    %v1056 = vrot.slane %v1055, 2
    %v1057 = vadd.f32 %v1055, %v1056
    %v1058 = vrot.slane %v1057, 1
    %v1059 = vadd.f32 %v1057, %v1058
    %v1060 = vmul.f32 %v1059, 0.004166667
    %v1062 = vsel %vm430, %v1060, 0
    %1064 = vmatprep.subr.mxu0 0.0
    %1065 = vmatpush1.msra.mxu0 %v444
    %1066 = vmatprep.subr.mxu0 0.0
    %1067 = vmatpush1.msra.mxu0 0.0
    %1068 = vmatprep.subr.mxu0 0.0
    %1069 = vmatpush1.msra.mxu0 0.0
    %1070 = vmatprep.subr.mxu0 0.0
    %1071 = vmatpush1.msra.mxu0 0.0
    %1072 = vmatprep.subr.mxu0 0.0
    %1073 = vmatpush1.msra.mxu0 0.0
    %1074 = vmatprep.subr.mxu0 0.0
    %1075 = vmatpush1.msra.mxu0 0.0
    %1076 = vmatprep.subr.mxu0 0.0
    %1077 = vmatpush1.msra.mxu0 0.0
    %1078 = vmatprep.subr.mxu0 0.0
    %1079 = vmatpush1.msra.mxu0 0.0
    %1080 = vmatprep.subr.mxu0 0.0
    %1081 = vmatpush1.msra.mxu0 0.0
    %1082 = vmatprep.subr.mxu0 0.0
    %1083 = vmatpush1.msra.mxu0 0.0
    %1084 = vmatprep.subr.mxu0 0.0
    %1085 = vmatpush1.msra.mxu0 0.0
    %1086 = vmatprep.subr.mxu0 0.0
    %1087 = vmatpush1.msra.mxu0 0.0
    %1088 = vmatprep.subr.mxu0 0.0
    %1089 = vmatpush1.msra.mxu0 0.0
    %1090 = vmatprep.subr.mxu0 0.0
    %1091 = vmatpush1.msra.mxu0 0.0
    %1092 = vmatprep.subr.mxu0 0.0
    %1093 = vmatpush1.msra.mxu0 0.0
    %1094 = vmatprep.subr.mxu0 0.0
    %1095 = vmatpush1.msra.mxu0 0.0
    %1096 = vmatprep.subr.mxu0 0.0
    %1097 = vmatpush1.msra.mxu0 0.0
    %1098 = vmatprep.subr.mxu0 0.0
    %1099 = vmatpush1.msra.mxu0 0.0
    %1100 = vmatprep.subr.mxu0 0.0
    %1101 = vmatpush1.msra.mxu0 0.0
    %1102 = vmatprep.subr.mxu0 0.0
    %1103 = vmatpush1.msra.mxu0 0.0
    %1104 = vmatprep.subr.mxu0 0.0
    %1105 = vmatpush1.msra.mxu0 0.0
    %1106 = vmatprep.subr.mxu0 0.0
    %1107 = vmatpush1.msra.mxu0 0.0
    %1108 = vmatprep.subr.mxu0 0.0
    %1109 = vmatpush1.msra.mxu0 0.0
    %1110 = vmatprep.subr.mxu0 0.0
    %1111 = vmatpush1.msra.mxu0 0.0
    %1112 = vmatprep.subr.mxu0 0.0
    %1113 = vmatpush1.msra.mxu0 0.0
    %1114 = vmatprep.subr.mxu0 0.0
    %1115 = vmatpush1.msra.mxu0 0.0
    %1116 = vmatprep.subr.mxu0 0.0
    %1117 = vmatpush1.msra.mxu0 0.0
    %1118 = vmatprep.subr.mxu0 0.0
    %1119 = vmatpush1.msra.mxu0 0.0
    %1120 = vmatprep.subr.mxu0 0.0
    %1121 = vmatpush1.msra.mxu0 0.0
    %1122 = vmatprep.subr.mxu0 0.0
    %1123 = vmatpush1.msra.mxu0 0.0
    %1124 = vmatprep.subr.mxu0 0.0
    %1125 = vmatpush1.msra.mxu0 0.0
    %1126 = vmatprep.subr.mxu0 0.0
    %1127 = vmatpush1.msra.mxu0 0.0
    %1128 = vmatprep.mubr.f32.mxu0 0.0
    %1129 = vmatmul.mubr.f32.gmra.mrb[0].mxu0 %v1062
    %v1130 = vpop.f32.mrb[0].mxu0
    %v1131 = vadd.f32 0.0, %v1130
    %v1132 = vpop.f32.mrb[0].mxu0
    %1133 = vdwg.mxu0
    %v1134 = vlaneseq
    %v1135 = vshrl.u32 %v1134, 7
    %v1136 = vsub.s32 0, %v1135
    %v1137 = vrot.slane %v1131, %v1136
    %v1138 = vsub.f32 %v979, %v1137
    %v1139 = vmul.f32 %v1138, %v1138
    %v1141 = vsel %vm356, %v1139, 0
    %1143 = vmatprep.subr.mxu0 0.0
    %1144 = vmatpush1.msra.mxu0 %v116
    %1145 = vmatprep.subr.mxu0 0.0
    %1146 = vmatpush1.msra.mxu0 %v117
    %1147 = vmatprep.subr.mxu0 0.0
    %1148 = vmatpush1.msra.mxu0 %v118
    %1149 = vmatprep.subr.mxu0 0.0
    %1150 = vmatpush1.msra.mxu0 %v119
    %1151 = vmatprep.subr.mxu0 0.0
    %1152 = vmatpush1.msra.mxu0 %v120
    %1153 = vmatprep.subr.mxu0 0.0
    %1154 = vmatpush1.msra.mxu0 %v121
    %1155 = vmatprep.subr.mxu0 0.0
    %1156 = vmatpush1.msra.mxu0 %v122
    %1157 = vmatprep.subr.mxu0 0.0
    %1158 = vmatpush1.msra.mxu0 %v123
    %1159 = vmatprep.subr.mxu0 0.0
    %1160 = vmatpush1.msra.mxu0 %v124
    %1161 = vmatprep.subr.mxu0 0.0
    %1162 = vmatpush1.msra.mxu0 %v125
    %1163 = vmatprep.subr.mxu0 0.0
    %1164 = vmatpush1.msra.mxu0 %v126
    %1165 = vmatprep.subr.mxu0 0.0
    %1166 = vmatpush1.msra.mxu0 %v127
    %1167 = vmatprep.subr.mxu0 0.0
    %1168 = vmatpush1.msra.mxu0 %v128
    %1169 = vmatprep.subr.mxu0 0.0
    %1170 = vmatpush1.msra.mxu0 %v129
    %1171 = vmatprep.subr.mxu0 0.0
    %1172 = vmatpush1.msra.mxu0 %v130
    %1173 = vmatprep.subr.mxu0 0.0
    %1174 = vmatpush1.msra.mxu0 0.0
    %1175 = vmatprep.subr.mxu0 0.0
    %1176 = vmatpush1.msra.mxu0 0.0
    %1177 = vmatprep.subr.mxu0 0.0
    %1178 = vmatpush1.msra.mxu0 0.0
    %1179 = vmatprep.subr.mxu0 0.0
    %1180 = vmatpush1.msra.mxu0 0.0
    %1181 = vmatprep.subr.mxu0 0.0
    %1182 = vmatpush1.msra.mxu0 0.0
    %1183 = vmatprep.subr.mxu0 0.0
    %1184 = vmatpush1.msra.mxu0 0.0
    %1185 = vmatprep.subr.mxu0 0.0
    %1186 = vmatpush1.msra.mxu0 0.0
    %1187 = vmatprep.subr.mxu0 0.0
    %1188 = vmatpush1.msra.mxu0 0.0
    %1189 = vmatprep.subr.mxu0 0.0
    %1190 = vmatpush1.msra.mxu0 0.0
    %1191 = vmatprep.subr.mxu0 0.0
    %1192 = vmatpush1.msra.mxu0 0.0
    %1193 = vmatprep.subr.mxu0 0.0
    %1194 = vmatpush1.msra.mxu0 0.0
    %1195 = vmatprep.subr.mxu0 0.0
    %1196 = vmatpush1.msra.mxu0 0.0
    %1197 = vmatprep.subr.mxu0 0.0
    %1198 = vmatpush1.msra.mxu0 0.0
    %1199 = vmatprep.subr.mxu0 0.0
    %1200 = vmatpush1.msra.mxu0 0.0
    %1201 = vmatprep.subr.mxu0 0.0
    %1202 = vmatpush1.msra.mxu0 0.0
    %1203 = vmatprep.subr.mxu0 0.0
    %1204 = vmatpush1.msra.mxu0 0.0
    %1205 = vmatprep.subr.mxu0 0.0
    %1206 = vmatpush1.msra.mxu0 0.0
    %1207 = vmatprep.mubr.f32.mxu0 0.0
    %1208 = vmatmul.mubr.f32.gmra.mrb[0].mxu0 %v1141
    %v1209 = vpop.f32.mrb[0].mxu0
    %v1210 = vadd.f32 0.0, %v1209
    %v1211 = vpop.f32.mrb[0].mxu0
    %1212 = vdwg.mxu0
    %v1213 = vsel %vm430, %v1210, 0.0
    %v1214 = vrot.slane %v1213, 4
    %v1215 = vadd.f32 %v1213, %v1214
    %v1216 = vrot.slane %v1215, 2
    %v1217 = vadd.f32 %v1215, %v1216
    %v1218 = vrot.slane %v1217, 1
    %v1219 = vadd.f32 %v1217, %v1218
    %v1220 = vmul.f32 %v1219, 0.004166667
    %v1221 = vadd.f32 %v1220, 1e-05
    %v1222 = vrsqrt.pop %v1221
    %v1223 = vmul.f32 %v780, %v1222
    %v1225 = vsel %vm430, %v1223, 0
    %1227 = vmatprep.subr.mxu0 0.0
    %1228 = vmatpush1.msra.mxu0 %v444
    %1229 = vmatprep.subr.mxu0 0.0
    %1230 = vmatpush1.msra.mxu0 0.0
    %1231 = vmatprep.subr.mxu0 0.0
    %1232 = vmatpush1.msra.mxu0 0.0
    %1233 = vmatprep.subr.mxu0 0.0
    %1234 = vmatpush1.msra.mxu0 0.0
    %1235 = vmatprep.subr.mxu0 0.0
    %1236 = vmatpush1.msra.mxu0 0.0
    %1237 = vmatprep.subr.mxu0 0.0
    %1238 = vmatpush1.msra.mxu0 0.0
    %1239 = vmatprep.subr.mxu0 0.0
    %1240 = vmatpush1.msra.mxu0 0.0
    %1241 = vmatprep.subr.mxu0 0.0
    %1242 = vmatpush1.msra.mxu0 0.0
    %1243 = vmatprep.subr.mxu0 0.0
    %1244 = vmatpush1.msra.mxu0 0.0
    %1245 = vmatprep.subr.mxu0 0.0
    %1246 = vmatpush1.msra.mxu0 0.0
    %1247 = vmatprep.subr.mxu0 0.0
    %1248 = vmatpush1.msra.mxu0 0.0
    %1249 = vmatprep.subr.mxu0 0.0
    %1250 = vmatpush1.msra.mxu0 0.0
    %1251 = vmatprep.subr.mxu0 0.0
    %1252 = vmatpush1.msra.mxu0 0.0
    %1253 = vmatprep.subr.mxu0 0.0
    %1254 = vmatpush1.msra.mxu0 0.0
    %1255 = vmatprep.subr.mxu0 0.0
    %1256 = vmatpush1.msra.mxu0 0.0
    %1257 = vmatprep.subr.mxu0 0.0
    %1258 = vmatpush1.msra.mxu0 0.0
    %1259 = vmatprep.subr.mxu0 0.0
    %1260 = vmatpush1.msra.mxu0 0.0
    %1261 = vmatprep.subr.mxu0 0.0
    %1262 = vmatpush1.msra.mxu0 0.0
    %1263 = vmatprep.subr.mxu0 0.0
    %1264 = vmatpush1.msra.mxu0 0.0
    %1265 = vmatprep.subr.mxu0 0.0
    %1266 = vmatpush1.msra.mxu0 0.0
    %1267 = vmatprep.subr.mxu0 0.0
    %1268 = vmatpush1.msra.mxu0 0.0
    %1269 = vmatprep.subr.mxu0 0.0
    %1270 = vmatpush1.msra.mxu0 0.0
    %1271 = vmatprep.subr.mxu0 0.0
    %1272 = vmatpush1.msra.mxu0 0.0
    %1273 = vmatprep.subr.mxu0 0.0
    %1274 = vmatpush1.msra.mxu0 0.0
    %1275 = vmatprep.subr.mxu0 0.0
    %1276 = vmatpush1.msra.mxu0 0.0
    %1277 = vmatprep.subr.mxu0 0.0
    %1278 = vmatpush1.msra.mxu0 0.0
    %1279 = vmatprep.subr.mxu0 0.0
    %1280 = vmatpush1.msra.mxu0 0.0
    %1281 = vmatprep.subr.mxu0 0.0
    %1282 = vmatpush1.msra.mxu0 0.0
    %1283 = vmatprep.subr.mxu0 0.0
    %1284 = vmatpush1.msra.mxu0 0.0
    %1285 = vmatprep.subr.mxu0 0.0
    %1286 = vmatpush1.msra.mxu0 0.0
    %1287 = vmatprep.subr.mxu0 0.0
    %1288 = vmatpush1.msra.mxu0 0.0
    %1289 = vmatprep.subr.mxu0 0.0
    %1290 = vmatpush1.msra.mxu0 0.0
    %1291 = vmatprep.mubr.f32.mxu0 0.0
    %1292 = vmatmul.mubr.f32.gmra.mrb[0].mxu0 %v1225
    %v1293 = vpop.f32.mrb[0].mxu0
    %v1294 = vadd.f32 0.0, %v1293
    %v1295 = vpop.f32.mrb[0].mxu0
    %1296 = vdwg.mxu0
    %v1297 = vlaneseq
    %v1298 = vshrl.u32 %v1297, 7
    %v1299 = vsub.s32 0, %v1298
    %v1300 = vrot.slane %v1294, %v1299
    %v1301 = vmul.f32 %v1138, %v1300
    %v1303 = vlaneseq
    %v1304 = vshrl.u32 %v1303, 7
    %v1305 = vsub.s32 0, %v1304
    %v1306 = vrot.slane %v781, %v1305
    %v1308 = vadd.f32 %v1301, %v1306
    %v1309 = vmax.f32 %v1308, 0.0
    %s1310 = scalar_lea.vmem %s3, 8
    %v1311 = vld [vmem:[%s1310] sm:$0xff]
    %1313 = vrot.lane.b32.xlu0 %v1311, 29
    %v1314 = vpop.permute.xlu0 %1313
    %1316 = vrot.lane.b32.xlu0 %v1311, 58
    %v1317 = vpop.permute.xlu0 %1316
    %v1319 = vsel %vm139, %v1311, %v1314
    %v1320 = vsel %vm141, %v1319, %v1317
    %v1322 = vsel %vm169, %v1320, 0
    %1324 = vmatprep.subr.mxu0 0.0
    %1325 = vmatpush1.msra.mxu0 %v792
    %1326 = vmatprep.subr.mxu0 0.0
    %1327 = vmatpush1.msra.mxu0 %v793
    %1328 = vmatprep.subr.mxu0 0.0
    %1329 = vmatpush1.msra.mxu0 %v794
    %1330 = vmatprep.subr.mxu0 0.0
    %1331 = vmatpush1.msra.mxu0 %v795
    %1332 = vmatprep.subr.mxu0 0.0
    %1333 = vmatpush1.msra.mxu0 %v796
    %1334 = vmatprep.subr.mxu0 0.0
    %1335 = vmatpush1.msra.mxu0 %v797
    %1336 = vmatprep.subr.mxu0 0.0
    %1337 = vmatpush1.msra.mxu0 %v798
    %1338 = vmatprep.subr.mxu0 0.0
    %1339 = vmatpush1.msra.mxu0 %v799
    %1340 = vmatprep.subr.mxu0 0.0
    %1341 = vmatpush1.msra.mxu0 %v800
    %1342 = vmatprep.subr.mxu0 0.0
    %1343 = vmatpush1.msra.mxu0 %v801
    %1344 = vmatprep.subr.mxu0 0.0
    %1345 = vmatpush1.msra.mxu0 %v802
    %1346 = vmatprep.subr.mxu0 0.0
    %1347 = vmatpush1.msra.mxu0 %v808
    %1348 = vmatprep.subr.mxu0 0.0
    %1349 = vmatpush1.msra.mxu0 0.0
    %1350 = vmatprep.subr.mxu0 0.0
    %1351 = vmatpush1.msra.mxu0 0.0
    %1352 = vmatprep.subr.mxu0 0.0
    %1353 = vmatpush1.msra.mxu0 0.0
    %1354 = vmatprep.subr.mxu0 0.0
    %1355 = vmatpush1.msra.mxu0 0.0
    %1356 = vmatprep.subr.mxu0 0.0
    %1357 = vmatpush1.msra.mxu0 0.0
    %1358 = vmatprep.subr.mxu0 0.0
    %1359 = vmatpush1.msra.mxu0 0.0
    %1360 = vmatprep.subr.mxu0 0.0
    %1361 = vmatpush1.msra.mxu0 0.0
    %1362 = vmatprep.subr.mxu0 0.0
    %1363 = vmatpush1.msra.mxu0 0.0
    %1364 = vmatprep.subr.mxu0 0.0
    %1365 = vmatpush1.msra.mxu0 0.0
    %1366 = vmatprep.subr.mxu0 0.0
    %1367 = vmatpush1.msra.mxu0 0.0
    %1368 = vmatprep.subr.mxu0 0.0
    %1369 = vmatpush1.msra.mxu0 0.0
    %1370 = vmatprep.subr.mxu0 0.0
    %1371 = vmatpush1.msra.mxu0 0.0
    %1372 = vmatprep.subr.mxu0 0.0
    %1373 = vmatpush1.msra.mxu0 0.0
    %1374 = vmatprep.subr.mxu0 0.0
    %1375 = vmatpush1.msra.mxu0 0.0
    %1376 = vmatprep.subr.mxu0 0.0
    %1377 = vmatpush1.msra.mxu0 0.0
    %1378 = vmatprep.subr.mxu0 0.0
    %1379 = vmatpush1.msra.mxu0 0.0
    %1380 = vmatprep.subr.mxu0 0.0
    %1381 = vmatpush1.msra.mxu0 0.0
    %1382 = vmatprep.subr.mxu0 0.0
    %1383 = vmatpush1.msra.mxu0 0.0
    %1384 = vmatprep.subr.mxu0 0.0
    %1385 = vmatpush1.msra.mxu0 0.0
    %1386 = vmatprep.subr.mxu0 0.0
    %1387 = vmatpush1.msra.mxu0 0.0
    %1388 = vmatprep.mubr.f32.mxu0 0.0
    %1389 = vmatmul.mubr.f32.gmra.mrb[0].mxu0 %v1322
    %v1390 = vpop.f32.mrb[0].mxu0
    %v1391 = vadd.f32 0.0, %v1390
    %v1392 = vpop.f32.mrb[0].mxu0
    %1393 = vdwg.mxu0
    %v1394 = vadd.f32 %v777, %v1391
    %s1395 = scalar_lea.vmem %s4, 8
    %v1396 = vld [vmem:[%s1395] sm:$0xff]
    %1398 = vrot.lane.b32.xlu0 %v1396, 29
    %v1399 = vpop.permute.xlu0 %1398
    %1401 = vrot.lane.b32.xlu0 %v1396, 58
    %v1402 = vpop.permute.xlu0 %1401
    %v1404 = vsel %vm139, %v1396, %v1399
    %v1405 = vsel %vm141, %v1404, %v1402
    %v1407 = vsel %vm169, %v1405, 0
    %1409 = vmatprep.subr.mxu0 0.0
    %1410 = vmatpush1.msra.mxu0 %v891
    %1411 = vmatprep.subr.mxu0 0.0
    %1412 = vmatpush1.msra.mxu0 %v892
    %1413 = vmatprep.subr.mxu0 0.0
    %1414 = vmatpush1.msra.mxu0 %v893
    %1415 = vmatprep.subr.mxu0 0.0
    %1416 = vmatpush1.msra.mxu0 %v894
    %1417 = vmatprep.subr.mxu0 0.0
    %1418 = vmatpush1.msra.mxu0 %v895
    %1419 = vmatprep.subr.mxu0 0.0
    %1420 = vmatpush1.msra.mxu0 %v896
    %1421 = vmatprep.subr.mxu0 0.0
    %1422 = vmatpush1.msra.mxu0 %v897
    %1423 = vmatprep.subr.mxu0 0.0
    %1424 = vmatpush1.msra.mxu0 %v898
    %1425 = vmatprep.subr.mxu0 0.0
    %1426 = vmatpush1.msra.mxu0 %v899
    %1427 = vmatprep.subr.mxu0 0.0
    %1428 = vmatpush1.msra.mxu0 %v900
    %1429 = vmatprep.subr.mxu0 0.0
    %1430 = vmatpush1.msra.mxu0 %v901
    %1431 = vmatprep.subr.mxu0 0.0
    %1432 = vmatpush1.msra.mxu0 %v907
    %1433 = vmatprep.subr.mxu0 0.0
    %1434 = vmatpush1.msra.mxu0 0.0
    %1435 = vmatprep.subr.mxu0 0.0
    %1436 = vmatpush1.msra.mxu0 0.0
    %1437 = vmatprep.subr.mxu0 0.0
    %1438 = vmatpush1.msra.mxu0 0.0
    %1439 = vmatprep.subr.mxu0 0.0
    %1440 = vmatpush1.msra.mxu0 0.0
    %1441 = vmatprep.subr.mxu0 0.0
    %1442 = vmatpush1.msra.mxu0 0.0
    %1443 = vmatprep.subr.mxu0 0.0
    %1444 = vmatpush1.msra.mxu0 0.0
    %1445 = vmatprep.subr.mxu0 0.0
    %1446 = vmatpush1.msra.mxu0 0.0
    %1447 = vmatprep.subr.mxu0 0.0
    %1448 = vmatpush1.msra.mxu0 0.0
    %1449 = vmatprep.subr.mxu0 0.0
    %1450 = vmatpush1.msra.mxu0 0.0
    %1451 = vmatprep.subr.mxu0 0.0
    %1452 = vmatpush1.msra.mxu0 0.0
    %1453 = vmatprep.subr.mxu0 0.0
    %1454 = vmatpush1.msra.mxu0 0.0
    %1455 = vmatprep.subr.mxu0 0.0
    %1456 = vmatpush1.msra.mxu0 0.0
    %1457 = vmatprep.subr.mxu0 0.0
    %1458 = vmatpush1.msra.mxu0 0.0
    %1459 = vmatprep.subr.mxu0 0.0
    %1460 = vmatpush1.msra.mxu0 0.0
    %1461 = vmatprep.subr.mxu0 0.0
    %1462 = vmatpush1.msra.mxu0 0.0
    %1463 = vmatprep.subr.mxu0 0.0
    %1464 = vmatpush1.msra.mxu0 0.0
    %1465 = vmatprep.subr.mxu0 0.0
    %1466 = vmatpush1.msra.mxu0 0.0
    %1467 = vmatprep.subr.mxu0 0.0
    %1468 = vmatpush1.msra.mxu0 0.0
    %1469 = vmatprep.subr.mxu0 0.0
    %1470 = vmatpush1.msra.mxu0 0.0
    %1471 = vmatprep.subr.mxu0 0.0
    %1472 = vmatpush1.msra.mxu0 0.0
    %1473 = vmatprep.mubr.f32.mxu0 0.0
    %1474 = vmatmul.mubr.f32.gmra.mrb[0].mxu0 %v1407
    %v1475 = vpop.f32.mrb[0].mxu0
    %v1476 = vadd.f32 0.0, %v1475
    %v1477 = vpop.f32.mrb[0].mxu0
    %1478 = vdwg.mxu0
    %v1479 = vadd.f32 %v1394, %v1476
    %v1481 = vsel %vm356, %v1479, 0
    %1483 = vmatprep.subr.mxu0 0.0
    %1484 = vmatpush1.msra.mxu0 %v116
    %1485 = vmatprep.subr.mxu0 0.0
    %1486 = vmatpush1.msra.mxu0 %v117
    %1487 = vmatprep.subr.mxu0 0.0
    %1488 = vmatpush1.msra.mxu0 %v118
    %1489 = vmatprep.subr.mxu0 0.0
    %1490 = vmatpush1.msra.mxu0 %v119
    %1491 = vmatprep.subr.mxu0 0.0
    %1492 = vmatpush1.msra.mxu0 %v120
    %1493 = vmatprep.subr.mxu0 0.0
    %1494 = vmatpush1.msra.mxu0 %v121
    %1495 = vmatprep.subr.mxu0 0.0
    %1496 = vmatpush1.msra.mxu0 %v122
    %1497 = vmatprep.subr.mxu0 0.0
    %1498 = vmatpush1.msra.mxu0 %v123
    %1499 = vmatprep.subr.mxu0 0.0
    %1500 = vmatpush1.msra.mxu0 %v124
    %1501 = vmatprep.subr.mxu0 0.0
    %1502 = vmatpush1.msra.mxu0 %v125
    %1503 = vmatprep.subr.mxu0 0.0
    %1504 = vmatpush1.msra.mxu0 %v126
    %1505 = vmatprep.subr.mxu0 0.0
    %1506 = vmatpush1.msra.mxu0 %v127
    %1507 = vmatprep.subr.mxu0 0.0
    %1508 = vmatpush1.msra.mxu0 %v128
    %1509 = vmatprep.subr.mxu0 0.0
    %1510 = vmatpush1.msra.mxu0 %v129
    %1511 = vmatprep.subr.mxu0 0.0
    %1512 = vmatpush1.msra.mxu0 %v130
    %1513 = vmatprep.subr.mxu0 0.0
    %1514 = vmatpush1.msra.mxu0 0.0
    %1515 = vmatprep.subr.mxu0 0.0
    %1516 = vmatpush1.msra.mxu0 0.0
    %1517 = vmatprep.subr.mxu0 0.0
    %1518 = vmatpush1.msra.mxu0 0.0
    %1519 = vmatprep.subr.mxu0 0.0
    %1520 = vmatpush1.msra.mxu0 0.0
    %1521 = vmatprep.subr.mxu0 0.0
    %1522 = vmatpush1.msra.mxu0 0.0
    %1523 = vmatprep.subr.mxu0 0.0
    %1524 = vmatpush1.msra.mxu0 0.0
    %1525 = vmatprep.subr.mxu0 0.0
    %1526 = vmatpush1.msra.mxu0 0.0
    %1527 = vmatprep.subr.mxu0 0.0
    %1528 = vmatpush1.msra.mxu0 0.0
    %1529 = vmatprep.subr.mxu0 0.0
    %1530 = vmatpush1.msra.mxu0 0.0
    %1531 = vmatprep.subr.mxu0 0.0
    %1532 = vmatpush1.msra.mxu0 0.0
    %1533 = vmatprep.subr.mxu0 0.0
    %1534 = vmatpush1.msra.mxu0 0.0
    %1535 = vmatprep.subr.mxu0 0.0
    %1536 = vmatpush1.msra.mxu0 0.0
    %1537 = vmatprep.subr.mxu0 0.0
    %1538 = vmatpush1.msra.mxu0 0.0
    %1539 = vmatprep.subr.mxu0 0.0
    %1540 = vmatpush1.msra.mxu0 0.0
    %1541 = vmatprep.subr.mxu0 0.0
    %1542 = vmatpush1.msra.mxu0 0.0
    %1543 = vmatprep.subr.mxu0 0.0
    %1544 = vmatpush1.msra.mxu0 0.0
    %1545 = vmatprep.subr.mxu0 0.0
    %1546 = vmatpush1.msra.mxu0 0.0
    %1547 = vmatprep.mubr.f32.mxu0 0.0
    %1548 = vmatmul.mubr.f32.gmra.mrb[0].mxu0 %v1481
    %v1549 = vpop.f32.mrb[0].mxu0
    %v1550 = vadd.f32 0.0, %v1549
    %v1551 = vpop.f32.mrb[0].mxu0
    %1552 = vdwg.mxu0
    %v1553 = vsel %vm430, %v1550, 0.0
    %v1554 = vrot.slane %v1553, 4
    %v1555 = vadd.f32 %v1553, %v1554
    %v1556 = vrot.slane %v1555, 2
    %v1557 = vadd.f32 %v1555, %v1556
    %v1558 = vrot.slane %v1557, 1
    %v1559 = vadd.f32 %v1557, %v1558
    %v1560 = vmul.f32 %v1559, 0.004166667
    %v1562 = vsel %vm430, %v1560, 0
    %1564 = vmatprep.subr.mxu0 0.0
    %1565 = vmatpush1.msra.mxu0 %v444
    %1566 = vmatprep.subr.mxu0 0.0
    %1567 = vmatpush1.msra.mxu0 0.0
    %1568 = vmatprep.subr.mxu0 0.0
    %1569 = vmatpush1.msra.mxu0 0.0
    %1570 = vmatprep.subr.mxu0 0.0
    %1571 = vmatpush1.msra.mxu0 0.0
    %1572 = vmatprep.subr.mxu0 0.0
    %1573 = vmatpush1.msra.mxu0 0.0
    %1574 = vmatprep.subr.mxu0 0.0
    %1575 = vmatpush1.msra.mxu0 0.0
    %1576 = vmatprep.subr.mxu0 0.0
    %1577 = vmatpush1.msra.mxu0 0.0
    %1578 = vmatprep.subr.mxu0 0.0
    %1579 = vmatpush1.msra.mxu0 0.0
    %1580 = vmatprep.subr.mxu0 0.0
    %1581 = vmatpush1.msra.mxu0 0.0
    %1582 = vmatprep.subr.mxu0 0.0
    %1583 = vmatpush1.msra.mxu0 0.0
    %1584 = vmatprep.subr.mxu0 0.0
    %1585 = vmatpush1.msra.mxu0 0.0
    %1586 = vmatprep.subr.mxu0 0.0
    %1587 = vmatpush1.msra.mxu0 0.0
    %1588 = vmatprep.subr.mxu0 0.0
    %1589 = vmatpush1.msra.mxu0 0.0
    %1590 = vmatprep.subr.mxu0 0.0
    %1591 = vmatpush1.msra.mxu0 0.0
    %1592 = vmatprep.subr.mxu0 0.0
    %1593 = vmatpush1.msra.mxu0 0.0
    %1594 = vmatprep.subr.mxu0 0.0
    %1595 = vmatpush1.msra.mxu0 0.0
    %1596 = vmatprep.subr.mxu0 0.0
    %1597 = vmatpush1.msra.mxu0 0.0
    %1598 = vmatprep.subr.mxu0 0.0
    %1599 = vmatpush1.msra.mxu0 0.0
    %1600 = vmatprep.subr.mxu0 0.0
    %1601 = vmatpush1.msra.mxu0 0.0
    %1602 = vmatprep.subr.mxu0 0.0
    %1603 = vmatpush1.msra.mxu0 0.0
    %1604 = vmatprep.subr.mxu0 0.0
    %1605 = vmatpush1.msra.mxu0 0.0
    %1606 = vmatprep.subr.mxu0 0.0
    %1607 = vmatpush1.msra.mxu0 0.0
    %1608 = vmatprep.subr.mxu0 0.0
    %1609 = vmatpush1.msra.mxu0 0.0
    %1610 = vmatprep.subr.mxu0 0.0
    %1611 = vmatpush1.msra.mxu0 0.0
    %1612 = vmatprep.subr.mxu0 0.0
    %1613 = vmatpush1.msra.mxu0 0.0
    %1614 = vmatprep.subr.mxu0 0.0
    %1615 = vmatpush1.msra.mxu0 0.0
    %1616 = vmatprep.subr.mxu0 0.0
    %1617 = vmatpush1.msra.mxu0 0.0
    %1618 = vmatprep.subr.mxu0 0.0
    %1619 = vmatpush1.msra.mxu0 0.0
    %1620 = vmatprep.subr.mxu0 0.0
    %1621 = vmatpush1.msra.mxu0 0.0
    %1622 = vmatprep.subr.mxu0 0.0
    %1623 = vmatpush1.msra.mxu0 0.0
    %1624 = vmatprep.subr.mxu0 0.0
    %1625 = vmatpush1.msra.mxu0 0.0
    %1626 = vmatprep.subr.mxu0 0.0
    %1627 = vmatpush1.msra.mxu0 0.0
    %1628 = vmatprep.mubr.f32.mxu0 0.0
    %1629 = vmatmul.mubr.f32.gmra.mrb[0].mxu0 %v1562
    %v1630 = vpop.f32.mrb[0].mxu0
    %v1631 = vadd.f32 0.0, %v1630
    %v1632 = vpop.f32.mrb[0].mxu0
    %1633 = vdwg.mxu0
    %v1634 = vlaneseq
    %v1635 = vshrl.u32 %v1634, 7
    %v1636 = vsub.s32 0, %v1635
    %v1637 = vrot.slane %v1631, %v1636
    %v1638 = vsub.f32 %v1479, %v1637
    %v1639 = vmul.f32 %v1638, %v1638
    %v1641 = vsel %vm356, %v1639, 0
    %1643 = vmatprep.subr.mxu0 0.0
    %1644 = vmatpush1.msra.mxu0 %v116
    %1645 = vmatprep.subr.mxu0 0.0
    %1646 = vmatpush1.msra.mxu0 %v117
    %1647 = vmatprep.subr.mxu0 0.0
    %1648 = vmatpush1.msra.mxu0 %v118
    %1649 = vmatprep.subr.mxu0 0.0
    %1650 = vmatpush1.msra.mxu0 %v119
    %1651 = vmatprep.subr.mxu0 0.0
    %1652 = vmatpush1.msra.mxu0 %v120
    %1653 = vmatprep.subr.mxu0 0.0
    %1654 = vmatpush1.msra.mxu0 %v121
    %1655 = vmatprep.subr.mxu0 0.0
    %1656 = vmatpush1.msra.mxu0 %v122
    %1657 = vmatprep.subr.mxu0 0.0
    %1658 = vmatpush1.msra.mxu0 %v123
    %1659 = vmatprep.subr.mxu0 0.0
    %1660 = vmatpush1.msra.mxu0 %v124
    %1661 = vmatprep.subr.mxu0 0.0
    %1662 = vmatpush1.msra.mxu0 %v125
    %1663 = vmatprep.subr.mxu0 0.0
    %1664 = vmatpush1.msra.mxu0 %v126
    %1665 = vmatprep.subr.mxu0 0.0
    %1666 = vmatpush1.msra.mxu0 %v127
    %1667 = vmatprep.subr.mxu0 0.0
    %1668 = vmatpush1.msra.mxu0 %v128
    %1669 = vmatprep.subr.mxu0 0.0
    %1670 = vmatpush1.msra.mxu0 %v129
    %1671 = vmatprep.subr.mxu0 0.0
    %1672 = vmatpush1.msra.mxu0 %v130
    %1673 = vmatprep.subr.mxu0 0.0
    %1674 = vmatpush1.msra.mxu0 0.0
    %1675 = vmatprep.subr.mxu0 0.0
    %1676 = vmatpush1.msra.mxu0 0.0
    %1677 = vmatprep.subr.mxu0 0.0
    %1678 = vmatpush1.msra.mxu0 0.0
    %1679 = vmatprep.subr.mxu0 0.0
    %1680 = vmatpush1.msra.mxu0 0.0
    %1681 = vmatprep.subr.mxu0 0.0
    %1682 = vmatpush1.msra.mxu0 0.0
    %1683 = vmatprep.subr.mxu0 0.0
    %1684 = vmatpush1.msra.mxu0 0.0
    %1685 = vmatprep.subr.mxu0 0.0
    %1686 = vmatpush1.msra.mxu0 0.0
    %1687 = vmatprep.subr.mxu0 0.0
    %1688 = vmatpush1.msra.mxu0 0.0
    %1689 = vmatprep.subr.mxu0 0.0
    %1690 = vmatpush1.msra.mxu0 0.0
    %1691 = vmatprep.subr.mxu0 0.0
    %1692 = vmatpush1.msra.mxu0 0.0
    %1693 = vmatprep.subr.mxu0 0.0
    %1694 = vmatpush1.msra.mxu0 0.0
    %1695 = vmatprep.subr.mxu0 0.0
    %1696 = vmatpush1.msra.mxu0 0.0
    %1697 = vmatprep.subr.mxu0 0.0
    %1698 = vmatpush1.msra.mxu0 0.0
    %1699 = vmatprep.subr.mxu0 0.0
    %1700 = vmatpush1.msra.mxu0 0.0
    %1701 = vmatprep.subr.mxu0 0.0
    %1702 = vmatpush1.msra.mxu0 0.0
    %1703 = vmatprep.subr.mxu0 0.0
    %1704 = vmatpush1.msra.mxu0 0.0
    %1705 = vmatprep.subr.mxu0 0.0
    %1706 = vmatpush1.msra.mxu0 0.0
    %1707 = vmatprep.mubr.f32.mxu0 0.0
    %1708 = vmatmul.mubr.f32.gmra.mrb[0].mxu0 %v1641
    %v1709 = vpop.f32.mrb[0].mxu0
    %v1710 = vadd.f32 0.0, %v1709
    %v1711 = vpop.f32.mrb[0].mxu0
    %1712 = vdwg.mxu0
    %v1713 = vsel %vm430, %v1710, 0.0
    %v1714 = vrot.slane %v1713, 4
    %v1715 = vadd.f32 %v1713, %v1714
    %v1716 = vrot.slane %v1715, 2
    %v1717 = vadd.f32 %v1715, %v1716
    %v1718 = vrot.slane %v1717, 1
    %v1719 = vadd.f32 %v1717, %v1718
    %v1720 = vmul.f32 %v1719, 0.004166667
    %v1721 = vadd.f32 %v1720, 1e-05
    %v1722 = vrsqrt.pop %v1721
    %v1723 = vmul.f32 %v780, %v1722
    %v1725 = vsel %vm430, %v1723, 0
    %1727 = vmatprep.subr.mxu0 0.0
    %1728 = vmatpush1.msra.mxu0 %v444
    %1729 = vmatprep.subr.mxu0 0.0
    %1730 = vmatpush1.msra.mxu0 0.0
    %1731 = vmatprep.subr.mxu0 0.0
    %1732 = vmatpush1.msra.mxu0 0.0
    %1733 = vmatprep.subr.mxu0 0.0
    %1734 = vmatpush1.msra.mxu0 0.0
    %1735 = vmatprep.subr.mxu0 0.0
    %1736 = vmatpush1.msra.mxu0 0.0
    %1737 = vmatprep.subr.mxu0 0.0
    %1738 = vmatpush1.msra.mxu0 0.0
    %1739 = vmatprep.subr.mxu0 0.0
    %1740 = vmatpush1.msra.mxu0 0.0
    %1741 = vmatprep.subr.mxu0 0.0
    %1742 = vmatpush1.msra.mxu0 0.0
    %1743 = vmatprep.subr.mxu0 0.0
    %1744 = vmatpush1.msra.mxu0 0.0
    %1745 = vmatprep.subr.mxu0 0.0
    %1746 = vmatpush1.msra.mxu0 0.0
    %1747 = vmatprep.subr.mxu0 0.0
    %1748 = vmatpush1.msra.mxu0 0.0
    %1749 = vmatprep.subr.mxu0 0.0
    %1750 = vmatpush1.msra.mxu0 0.0
    %1751 = vmatprep.subr.mxu0 0.0
    %1752 = vmatpush1.msra.mxu0 0.0
    %1753 = vmatprep.subr.mxu0 0.0
    %1754 = vmatpush1.msra.mxu0 0.0
    %1755 = vmatprep.subr.mxu0 0.0
    %1756 = vmatpush1.msra.mxu0 0.0
    %1757 = vmatprep.subr.mxu0 0.0
    %1758 = vmatpush1.msra.mxu0 0.0
    %1759 = vmatprep.subr.mxu0 0.0
    %1760 = vmatpush1.msra.mxu0 0.0
    %1761 = vmatprep.subr.mxu0 0.0
    %1762 = vmatpush1.msra.mxu0 0.0
    %1763 = vmatprep.subr.mxu0 0.0
    %1764 = vmatpush1.msra.mxu0 0.0
    %1765 = vmatprep.subr.mxu0 0.0
    %1766 = vmatpush1.msra.mxu0 0.0
    %1767 = vmatprep.subr.mxu0 0.0
    %1768 = vmatpush1.msra.mxu0 0.0
    %1769 = vmatprep.subr.mxu0 0.0
    %1770 = vmatpush1.msra.mxu0 0.0
    %1771 = vmatprep.subr.mxu0 0.0
    %1772 = vmatpush1.msra.mxu0 0.0
    %1773 = vmatprep.subr.mxu0 0.0
    %1774 = vmatpush1.msra.mxu0 0.0
    %1775 = vmatprep.subr.mxu0 0.0
    %1776 = vmatpush1.msra.mxu0 0.0
    %1777 = vmatprep.subr.mxu0 0.0
    %1778 = vmatpush1.msra.mxu0 0.0
    %1779 = vmatprep.subr.mxu0 0.0
    %1780 = vmatpush1.msra.mxu0 0.0
    %1781 = vmatprep.subr.mxu0 0.0
    %1782 = vmatpush1.msra.mxu0 0.0
    %1783 = vmatprep.subr.mxu0 0.0
    %1784 = vmatpush1.msra.mxu0 0.0
    %1785 = vmatprep.subr.mxu0 0.0
    %1786 = vmatpush1.msra.mxu0 0.0
    %1787 = vmatprep.subr.mxu0 0.0
    %1788 = vmatpush1.msra.mxu0 0.0
    %1789 = vmatprep.subr.mxu0 0.0
    %1790 = vmatpush1.msra.mxu0 0.0
    %1791 = vmatprep.mubr.f32.mxu0 0.0
    %1792 = vmatmul.mubr.f32.gmra.mrb[0].mxu0 %v1725
    %v1793 = vpop.f32.mrb[0].mxu0
    %v1794 = vadd.f32 0.0, %v1793
    %v1795 = vpop.f32.mrb[0].mxu0
    %1796 = vdwg.mxu0
    %v1797 = vlaneseq
    %v1798 = vshrl.u32 %v1797, 7
    %v1799 = vsub.s32 0, %v1798
    %v1800 = vrot.slane %v1794, %v1799
    %v1801 = vmul.f32 %v1638, %v1800
    %v1802 = vadd.f32 %v1801, %v1306
    %v1803 = vmax.f32 %v1802, 0.0
    %v1804 = vmin.f32 %v1309, %v1803
    %v1805 = vld [vmem:[%s15] sm:$0x1]
    %v1807 = vlaneseq
    %v1808 = vshrl.u32 %v1807, 7
    %v1809 = vsub.s32 0, %v1808
    %v1810 = vrot.slane %v1805, %v1809
    %v1812 = vmul.f32 %v691, %v1810
    %v1813 = vld [vmem:[%s16] sm:$0x1]
    %v1815 = vlaneseq
    %v1816 = vshrl.u32 %v1815, 7
    %v1817 = vsub.s32 0, %v1816
    %v1818 = vrot.slane %v1813, %v1817
    %v1820 = vmul.f32 %v1804, %v1818
    %v1821 = vadd.f32 %v1812, %v1820
    %v1822 = vsel %vm356, %v1821, 0.0
    %1823 = vadd.xlane.f32.xlu0 %v1822
    %v1824 = vpop.xlane.xlu0 %1823
    %s1825 = sld [smem:[#allocation2]]
    %v1826 = vstv %s1825
    %v1827 = vadd.f32 %v1824, %v1826
    %vm1828 = vcmask 7168
    %1829 = vst.msk [vmem:[%s18] sm:$0xff] %vm1828, %v1827
    // Predicated region
    $region90: #{tpu_custom_call.1} parent=1 // pred_check
      _
    $region91: #{tpu_custom_call.1} parent=1 // pred_check_branch
      %1831 = sbr.rel (0) target = $region93
    $region92: #{tpu_custom_call.1} parent=1 // pred_region
      _
    $region93: #{tpu_custom_call.1} parent=1 // pred_fallthru
      _
    // Predicated region
    $region94: #{tpu_custom_call.1} parent=1 // pred_check
      _
    $region95: #{tpu_custom_call.1} parent=1 // pred_check_branch
      %1833 = sbr.rel (0) target = $region97
    $region96: #{tpu_custom_call.1} parent=1 // pred_region
      _
    $region97: #{tpu_custom_call.1} parent=1 // pred_fallthru
      _
    %1834 = vsyncpa [#allocation4], 1
    %1835 = vsyncpa [#allocation6], 1
    %1836 = vsyncpa [#allocation9], 1

</llo_original>
